<compile_context>
chip_gen: v6e
topology: v6e:2x2x1
jax: 0.10.0
libtpu: 0.0.40
codegen_flags: <defaults>
</compile_context>

<pallas_src>
import functools

import numpy as np
import jax
import jax.numpy as jnp
from jax import lax
from jax.experimental import pallas as pl
from jax.experimental.pallas import tpu as pltpu

_SELU_ALPHA = 1.6732632423543772
_SELU_SCALE = 1.0507009873554805


def _selu(x):
    return _SELU_SCALE * jnp.where(x > 0, x, _SELU_ALPHA * (jnp.exp(x) - 1.0))


# --------------------------------------------------------------------------
# Fused kernel: 3x3 conv -> SELU -> 1x1 conv -> sigmoid  (t branch)
#               avg-pool -> 1x1 MLP -> sigmoid            (a branch)
#               bilinear upsample + clamp + j0            (fusion)
# --------------------------------------------------------------------------
def _fused_kernel(B, H, W, C, Hi, Wi,
                  x_ref, w1_ref, b1_ref, w2t_ref, b2_ref,
                  wa1_ref, ba1_ref, wa2_ref, ba2_ref, wa3t_ref, ba3_ref,
                  lbd_ref, img_ref,
                  j0_ref, tup_ref, a_ref,
                  xpad_ref):
    HW = H * W
    HiWi = Hi * Wi

    # ---- zero-pad amlif into VMEM scratch (3x3 conv halo, no HBM pad copy) --
    xpad_ref[...] = jnp.zeros_like(xpad_ref)
    xpad_ref[:, 1:H + 1, 1:W + 1, :] = x_ref[...]

    # ---- t branch: 3x3 conv as ONE im2col matmul, batch folded into M ------
    cols = []
    for ky in range(3):
        for kx in range(3):
            cols.append(
                xpad_ref[:, ky:ky + H, kx:kx + W, :].reshape(B * HW, C))
    patches = jnp.concatenate(cols, axis=-1)                 # (B*H*W, 9*C)
    h = _selu(jnp.dot(patches, w1_ref[...],
                      preferred_element_type=jnp.float32) + b1_ref[...])

    # 1x1 conv (out_channels=1): contract C/2, result is lane-major (1, B*H*W)
    t_logit = lax.dot_general(w2t_ref[...], h, (((1,), (1,)), ((), ())),
                              preferred_element_type=jnp.float32) + b2_ref[...]
    ts = jax.nn.sigmoid(t_logit)                             # (1, B*H*W)

    # ---- bilinear upsample for all batches: one matmul vs block-diag interp
    up = jnp.dot(ts, lbd_ref[...],
                 preferred_element_type=jnp.float32)         # (1, B*Hi*Wi)
    up = jnp.clip(up, 1e-8, 1.0)
    tup_ref[...] = up                                        # lane-dense store
    rcp = pl.reciprocal(up, approx=False)                    # once per pixel

    # ---- a branch: global avg-pool + 1x1-conv MLP (batch folded into M) ----
    pooled = jnp.mean(x_ref[...].reshape(B, HW, C), axis=1)  # (B, C)
    h1 = _selu(jnp.dot(pooled, wa1_ref[...],
                       preferred_element_type=jnp.float32) + ba1_ref[...])
    h2 = _selu(jnp.dot(h1, wa2_ref[...],
                       preferred_element_type=jnp.float32) + ba2_ref[...])
    a = jax.nn.sigmoid(jnp.sum(h2 * wa3t_ref[...], axis=-1, keepdims=True)
                       + ba3_ref[...])                       # (B, 1)
    a_ref[...] = a

    # ---- fused j0, channel-outer layout (lane dim = Hi*Wi = 256) -----------
    for b in range(B):                                       # B is small/static
        img_b = img_ref[b]                                   # (Cimg, Hi*Wi)
        up_b = up[:, b * HiWi:(b + 1) * HiWi]                # (1, Hi*Wi)
        rcp_b = rcp[:, b * HiWi:(b + 1) * HiWi]
        a_b = a[b:b + 1, :]                                  # (1, 1)
        j0_ref[b] = jnp.clip((img_b - a_b * (1.0 - up_b)) * rcp_b, 0.0, 1.0)


# --------------------------------------------------------------------------
# Glue / parameter setup (plain JAX)
# --------------------------------------------------------------------------
def _interp_matrix(out_size, in_size):
    # PyTorch bilinear interpolation weights, align_corners=False.
    scale = in_size / out_size
    dst = jnp.arange(out_size, dtype=jnp.float32)
    src = jnp.maximum(scale * (dst + 0.5) - 0.5, 0.0)
    i0 = jnp.floor(src).astype(jnp.int32)
    i1 = jnp.minimum(i0 + 1, in_size - 1)
    w1 = src - i0.astype(jnp.float32)
    w0 = 1.0 - w1
    rows = jnp.arange(out_size)
    m = jnp.zeros((out_size, in_size), jnp.float32)
    m = m.at[rows, i0].add(w0)
    m = m.at[rows, i1].add(w1)
    return m


@jax.jit
def as_model_forward(amlif, img, params):
    B, H, W, C = amlif.shape
    C2 = C // 2
    _, Hi, Wi, Cimg = img.shape
    HW, HiWi = H * W, Hi * Wi
    (w1, b1, w2, b2, wa1, ba1, wa2, ba2, wa3, ba3) = params

    # Weight re-layouts (tiny, done once under jit).
    w1m = w1.reshape(9 * C, C2)          # taps stacked along K: (9*C, C/2)
    w2t = w2.reshape(1, C2)              # (C/2, 1) -> (1, C/2)
    wa3t = wa3.reshape(1, C)             # (C, 1)   -> (1, C)

    # Block-diagonal separable-bilinear matrix: (B*H*W, B*Hi*Wi).
    ly = _interp_matrix(Hi, H)                          # (Hi, H)
    lx = _interp_matrix(Wi, W)                          # (Wi, W)
    l_up = jnp.kron(ly, lx)                             # (Hi*Wi, H*W)
    lbd = jnp.kron(jnp.eye(B, dtype=jnp.float32), l_up.T)

    # Channel-outer, lane-dense img layout for the kernel.
    img_f = img.transpose(0, 3, 1, 2).reshape(B, Cimg, HiWi)

    kern = functools.partial(_fused_kernel, B, H, W, C, Hi, Wi)

    def full(shape):
        return pl.BlockSpec(shape, lambda i: (0,) * len(shape))

    j0_f, t_row, a_val = pl.pallas_call(
        kern,
        out_shape=(jax.ShapeDtypeStruct((B, Cimg, HiWi), jnp.float32),
                   jax.ShapeDtypeStruct((1, B * HiWi), jnp.float32),
                   jax.ShapeDtypeStruct((B, 1), jnp.float32)),
        grid=(1,),
        in_specs=[
            full((B, H, W, C)),          # amlif (unpadded)
            full((9 * C, C2)),           # conv3x3 weight (im2col form)
            full((1, C2)),               # conv3x3 bias
            full((1, C2)),               # conv1x1 weight (transposed)
            full((1, 1)),                # conv1x1 bias
            full((C, C)),                # a-branch w1
            full((1, C)),                # a-branch b1
            full((C, C)),                # a-branch w2
            full((1, C)),                # a-branch b2
            full((1, C)),                # a-branch w3 (transposed)
            full((1, 1)),                # a-branch b3
            full((B * HW, B * HiWi)),    # block-diag bilinear matrix
            full((B, Cimg, HiWi)),       # img (channel-outer, flattened)
        ],
        out_specs=(full((B, Cimg, HiWi)),
                   full((1, B * HiWi)),
                   full((B, 1))),
        scratch_shapes=[pltpu.VMEM((B, H + 2, W + 2, C), jnp.float32)],
        compiler_params=pltpu.CompilerParams(
            dimension_semantics=("arbitrary",)),
    )(amlif, w1m, b1, w2t, b2, wa1, ba1, wa2, ba2, wa3t, ba3, lbd, img_f)

    j0 = j0_f.reshape(B, Cimg, Hi, Wi).transpose(0, 2, 3, 1)   # back to NHWC
    t_up = t_row.reshape(B, Hi, Wi, 1)
    a_out = a_val.reshape(B, 1, 1, 1)
    return j0, t_up, a_out


# --------------------------------------------------------------------------
# Pure-JAX reference (f32, HIGHEST precision) for the sanity check
# --------------------------------------------------------------------------
def ref_forward(amlif, img, params):
    (w1, b1, w2, b2, wa1, ba1, wa2, ba2, wa3, ba3) = params
    B, H, W, C = amlif.shape
    _, Hi, Wi, _ = img.shape
    C2 = C // 2
    hp = lax.Precision.HIGHEST

    w1_hwio = w1.reshape(3, 3, C, C2)
    h = lax.conv_general_dilated(
        amlif, w1_hwio, window_strides=(1, 1), padding='SAME',
        dimension_numbers=('NHWC', 'HWIO', 'NHWC'),
        precision=hp) + b1.reshape(1, 1, 1, C2)
    h = _selu(h)
    t_logit = jnp.einsum('bhwc,co->bhwo', h, w2,
                         precision=hp) + b2.reshape(1, 1, 1, 1)
    ts = jax.nn.sigmoid(t_logit)[..., 0]                        # (B, H, W)

    pooled = amlif.mean(axis=(1, 2))                            # (B, C)
    h1 = _selu(jnp.dot(pooled, wa1, precision=hp) + ba1)
    h2 = _selu(jnp.dot(h1, wa2, precision=hp) + ba2)
    a = jax.nn.sigmoid(jnp.dot(h2, wa3, precision=hp) + ba3)    # (B, 1)

    ly = _interp_matrix(Hi, H)                                  # (Hi, H)
    lx = _interp_matrix(Wi, W)                                  # (Wi, W)
    t_up = jnp.einsum('oh,bhw,pw->bop', ly, ts, lx, precision=hp)
    t_up = jnp.clip(t_up, 1e-8, 1.0)
    j0 = jnp.clip((img - a[:, None, None, :] * (1.0 - t_up[..., None]))
                  / t_up[..., None], 0.0, 1.0)
    return j0, t_up, a


if __name__ == "__main__":
    # Small shapes consistent with the module: num_features=32 channels,
    # amlif spatial 8x8, img spatial 16x16 with 3 channels, batch 2.
    B, C, H, W = 2, 32, 8, 8
    Hi, Wi, Cimg = 16, 16, 3
    C2 = C // 2

    key = jax.random.PRNGKey(0)
    keys = jax.random.split(key, 12)
    params = (
        0.10 * jax.random.normal(keys[0], (9, C, C2), jnp.float32),   # t conv3x3 w
        0.05 * jax.random.normal(keys[1], (1, C2), jnp.float32),      # t conv3x3 b
        0.10 * jax.random.normal(keys[2], (C2, 1), jnp.float32),      # t conv1x1 w
        0.05 * jax.random.normal(keys[3], (1, 1), jnp.float32),       # t conv1x1 b
        0.10 * jax.random.normal(keys[4], (C, C), jnp.float32),       # a conv1 w
        0.05 * jax.random.normal(keys[5], (1, C), jnp.float32),       # a conv1 b
        0.10 * jax.random.normal(keys[6], (C, C), jnp.float32),       # a conv2 w
        0.05 * jax.random.normal(keys[7], (1, C), jnp.float32),       # a conv2 b
        0.10 * jax.random.normal(keys[8], (C, 1), jnp.float32),       # a conv3 w
        0.05 * jax.random.normal(keys[9], (1, 1), jnp.float32),       # a conv3 b
    )
    amlif = jax.random.normal(keys[10], (B, H, W, C), jnp.float32)
    img = jax.random.uniform(keys[11], (B, Hi, Wi, Cimg), jnp.float32)

    j0, t, a = jax.block_until_ready(as_model_forward(amlif, img, params))

    # Sanity check against a pure-JAX reference (tight f32 tolerances).
    j0_exp, t_exp, a_exp = ref_forward(amlif, img, params)
    np.testing.assert_allclose(np.asarray(a).reshape(B, 1), np.asarray(a_exp),
                               atol=1e-4, rtol=0)
    np.testing.assert_allclose(np.asarray(t)[..., 0], np.asarray(t_exp),
                               atol=1e-4, rtol=0)
    np.testing.assert_allclose(np.asarray(j0), np.asarray(j0_exp),
                               atol=1e-3, rtol=0)

    print("KERNEL_OK")
</pallas_src>

<mosaic_0001>
module attributes {stable_mosaic.version = 11 : i64} {
  func.func private @main(%arg0: i32) attributes {dimension_semantics = [#tpu.dimension_semantics<core_parallel>], iteration_bounds = array<i64: 2>, tpu.core_type = #tpu.core_type<sc_scalar_subcore>, window_params = []} {
    return
  }
}

module attributes {stable_mosaic.version = 11 : i64} {
  func.func private @main(%arg0: i32) attributes {dimension_semantics = [#tpu.dimension_semantics<core_parallel>], iteration_bounds = array<i64: 2>, tpu.core_type = #tpu.core_type<sc_scalar_subcore>, window_params = []} {
    return
  }
}

module attributes {stable_mosaic.version = 11 : i64} {
  func.func @_fused_kernel(%arg0: i32, %arg1: memref<2x8x8x32xf32, #tpu.memory_space<vmem>>, %arg2: memref<288x16xf32, #tpu.memory_space<vmem>>, %arg3: memref<1x16xf32, #tpu.memory_space<vmem>>, %arg4: memref<1x16xf32, #tpu.memory_space<vmem>>, %arg5: memref<1x1xf32, #tpu.memory_space<vmem>>, %arg6: memref<32x32xf32, #tpu.memory_space<vmem>>, %arg7: memref<1x32xf32, #tpu.memory_space<vmem>>, %arg8: memref<32x32xf32, #tpu.memory_space<vmem>>, %arg9: memref<1x32xf32, #tpu.memory_space<vmem>>, %arg10: memref<1x32xf32, #tpu.memory_space<vmem>>, %arg11: memref<1x1xf32, #tpu.memory_space<vmem>>, %arg12: memref<128x512xf32, #tpu.memory_space<vmem>>, %arg13: memref<2x3x256xf32, #tpu.memory_space<vmem>>, %arg14: memref<2x3x256xf32, #tpu.memory_space<vmem>>, %arg15: memref<1x512xf32, #tpu.memory_space<vmem>>, %arg16: memref<2x1xf32, #tpu.memory_space<vmem>>, %arg17: memref<2x10x10x32xf32, #tpu.memory_space<vmem>>) attributes {dimension_semantics = [#tpu.dimension_semantics<arbitrary>], iteration_bounds = array<i64: 1>, scalar_prefetch = 0 : i64, scratch_operands = 1 : i64, tpu.core_type = #tpu.core_type<tc>, window_params = [{pipeline_mode = #tpu.pipeline_mode<synchronous>, transform_indices = @transform_0, window_bounds = array<i64: 2, 8, 8, 32>}, {pipeline_mode = #tpu.pipeline_mode<synchronous>, transform_indices = @transform_1, window_bounds = array<i64: 288, 16>}, {pipeline_mode = #tpu.pipeline_mode<synchronous>, transform_indices = @transform_2, window_bounds = array<i64: 1, 16>}, {pipeline_mode = #tpu.pipeline_mode<synchronous>, transform_indices = @transform_3, window_bounds = array<i64: 1, 16>}, {pipeline_mode = #tpu.pipeline_mode<synchronous>, transform_indices = @transform_4, window_bounds = array<i64: 1, 1>}, {pipeline_mode = #tpu.pipeline_mode<synchronous>, transform_indices = @transform_5, window_bounds = array<i64: 32, 32>}, {pipeline_mode = #tpu.pipeline_mode<synchronous>, transform_indices = @transform_6, window_bounds = array<i64: 1, 32>}, {pipeline_mode = #tpu.pipeline_mode<synchronous>, transform_indices = @transform_7, window_bounds = array<i64: 32, 32>}, {pipeline_mode = #tpu.pipeline_mode<synchronous>, transform_indices = @transform_8, window_bounds = array<i64: 1, 32>}, {pipeline_mode = #tpu.pipeline_mode<synchronous>, transform_indices = @transform_9, window_bounds = array<i64: 1, 32>}, {pipeline_mode = #tpu.pipeline_mode<synchronous>, transform_indices = @transform_10, window_bounds = array<i64: 1, 1>}, {pipeline_mode = #tpu.pipeline_mode<synchronous>, transform_indices = @transform_11, window_bounds = array<i64: 128, 512>}, {pipeline_mode = #tpu.pipeline_mode<synchronous>, transform_indices = @transform_12, window_bounds = array<i64: 2, 3, 256>}, {pipeline_mode = #tpu.pipeline_mode<synchronous>, transform_indices = @transform_13, window_bounds = array<i64: 2, 3, 256>}, {pipeline_mode = #tpu.pipeline_mode<synchronous>, transform_indices = @transform_14, window_bounds = array<i64: 1, 512>}, {pipeline_mode = #tpu.pipeline_mode<synchronous>, transform_indices = @transform_15, window_bounds = array<i64: 2, 1>}]} {
    %cst = arith.constant 0.000000e+00 : f32
    %0 = vector.broadcast %cst : f32 to vector<2x10x10x32xf32>
    %c0 = arith.constant 0 : index
    %c0_0 = arith.constant 0 : index
    %c0_1 = arith.constant 0 : index
    %c0_2 = arith.constant 0 : index
    %1 = vector.load %arg17[%c0, %c0_0, %c0_1, %c0_2] : memref<2x10x10x32xf32, #tpu.memory_space<vmem>>, vector<2x10x10x32xf32>
    tpu.vector_store %arg17[%c0, %c0_0, %c0_1, %c0_2], %0 {strides = array<i32>} : memref<2x10x10x32xf32, #tpu.memory_space<vmem>>, vector<2x10x10x32xf32>,
    %c0_3 = arith.constant 0 : index
    %c0_4 = arith.constant 0 : index
    %c0_5 = arith.constant 0 : index
    %c0_6 = arith.constant 0 : index
    %2 = vector.load %arg1[%c0_3, %c0_4, %c0_5, %c0_6] : memref<2x8x8x32xf32, #tpu.memory_space<vmem>>, vector<2x8x8x32xf32>
    %c0_7 = arith.constant 0 : index
    %c1 = arith.constant 1 : index
    %c1_8 = arith.constant 1 : index
    %c0_9 = arith.constant 0 : index
    %3 = vector.load %arg17[%c0_7, %c1, %c1_8, %c0_9] : memref<2x10x10x32xf32, #tpu.memory_space<vmem>>, vector<2x8x8x32xf32>
    tpu.vector_store %arg17[%c0_7, %c1, %c1_8, %c0_9], %2 {strides = array<i32>} : memref<2x10x10x32xf32, #tpu.memory_space<vmem>>, vector<2x8x8x32xf32>,
    %c0_10 = arith.constant 0 : index
    %c0_11 = arith.constant 0 : index
    %c0_12 = arith.constant 0 : index
    %c0_13 = arith.constant 0 : index
    %4 = vector.load %arg17[%c0_10, %c0_11, %c0_12, %c0_13] : memref<2x10x10x32xf32, #tpu.memory_space<vmem>>, vector<2x8x8x32xf32>
    %5 = vector.shape_cast %4 : vector<2x8x8x32xf32> to vector<128x32xf32>
    %c0_14 = arith.constant 0 : index
    %c0_15 = arith.constant 0 : index
    %c1_16 = arith.constant 1 : index
    %c0_17 = arith.constant 0 : index
    %6 = vector.load %arg17[%c0_14, %c0_15, %c1_16, %c0_17] : memref<2x10x10x32xf32, #tpu.memory_space<vmem>>, vector<2x8x8x32xf32>
    %7 = vector.shape_cast %6 : vector<2x8x8x32xf32> to vector<128x32xf32>
    %c0_18 = arith.constant 0 : index
    %c0_19 = arith.constant 0 : index
    %c2 = arith.constant 2 : index
    %c0_20 = arith.constant 0 : index
    %8 = vector.load %arg17[%c0_18, %c0_19, %c2, %c0_20] : memref<2x10x10x32xf32, #tpu.memory_space<vmem>>, vector<2x8x8x32xf32>
    %9 = vector.shape_cast %8 : vector<2x8x8x32xf32> to vector<128x32xf32>
    %c0_21 = arith.constant 0 : index
    %c1_22 = arith.constant 1 : index
    %c0_23 = arith.constant 0 : index
    %c0_24 = arith.constant 0 : index
    %10 = vector.load %arg17[%c0_21, %c1_22, %c0_23, %c0_24] : memref<2x10x10x32xf32, #tpu.memory_space<vmem>>, vector<2x8x8x32xf32>
    %11 = vector.shape_cast %10 : vector<2x8x8x32xf32> to vector<128x32xf32>
    %c0_25 = arith.constant 0 : index
    %c1_26 = arith.constant 1 : index
    %c1_27 = arith.constant 1 : index
    %c0_28 = arith.constant 0 : index
    %12 = vector.load %arg17[%c0_25, %c1_26, %c1_27, %c0_28] : memref<2x10x10x32xf32, #tpu.memory_space<vmem>>, vector<2x8x8x32xf32>
    %13 = vector.shape_cast %12 : vector<2x8x8x32xf32> to vector<128x32xf32>
    %c0_29 = arith.constant 0 : index
    %c1_30 = arith.constant 1 : index
    %c2_31 = arith.constant 2 : index
    %c0_32 = arith.constant 0 : index
    %14 = vector.load %arg17[%c0_29, %c1_30, %c2_31, %c0_32] : memref<2x10x10x32xf32, #tpu.memory_space<vmem>>, vector<2x8x8x32xf32>
    %15 = vector.shape_cast %14 : vector<2x8x8x32xf32> to vector<128x32xf32>
    %c0_33 = arith.constant 0 : index
    %c2_34 = arith.constant 2 : index
    %c0_35 = arith.constant 0 : index
    %c0_36 = arith.constant 0 : index
    %16 = vector.load %arg17[%c0_33, %c2_34, %c0_35, %c0_36] : memref<2x10x10x32xf32, #tpu.memory_space<vmem>>, vector<2x8x8x32xf32>
    %17 = vector.shape_cast %16 : vector<2x8x8x32xf32> to vector<128x32xf32>
    %c0_37 = arith.constant 0 : index
    %c2_38 = arith.constant 2 : index
    %c1_39 = arith.constant 1 : index
    %c0_40 = arith.constant 0 : index
    %18 = vector.load %arg17[%c0_37, %c2_38, %c1_39, %c0_40] : memref<2x10x10x32xf32, #tpu.memory_space<vmem>>, vector<2x8x8x32xf32>
    %19 = vector.shape_cast %18 : vector<2x8x8x32xf32> to vector<128x32xf32>
    %c0_41 = arith.constant 0 : index
    %c2_42 = arith.constant 2 : index
    %c2_43 = arith.constant 2 : index
    %c0_44 = arith.constant 0 : index
    %20 = vector.load %arg17[%c0_41, %c2_42, %c2_43, %c0_44] : memref<2x10x10x32xf32, #tpu.memory_space<vmem>>, vector<2x8x8x32xf32>
    %21 = vector.shape_cast %20 : vector<2x8x8x32xf32> to vector<128x32xf32>
    %22 = tpu.concatenate %5, %7, %9, %11, %13, %15, %17, %19, %21 in 1 : vector<128x32xf32>, vector<128x32xf32>, vector<128x32xf32>, vector<128x32xf32>, vector<128x32xf32>, vector<128x32xf32>, vector<128x32xf32>, vector<128x32xf32>, vector<128x32xf32> -> vector<128x288xf32>
    %c0_45 = arith.constant 0 : index
    %c0_46 = arith.constant 0 : index
    %23 = vector.load %arg2[%c0_45, %c0_46] : memref<288x16xf32, #tpu.memory_space<vmem>>, vector<288x16xf32>
    %cst_47 = arith.constant dense<0.000000e+00> : vector<128x16xf32>
    %24 = tpu.matmul %22, %23, %cst_47 {dimension_numbers = #tpu.dot_dimension_numbers<[1], [0], [0], [1], [0, 0, 1, 1], [], []>} : vector<128x288xf32>, vector<288x16xf32>, vector<128x16xf32> -> vector<128x16xf32>
    %c0_48 = arith.constant 0 : index
    %c0_49 = arith.constant 0 : index
    %25 = vector.load %arg3[%c0_48, %c0_49] : memref<1x16xf32, #tpu.memory_space<vmem>>, vector<1x16xf32>
    %26 = vector.broadcast %25 : vector<1x16xf32> to vector<128x16xf32>
    %27 = arith.addf %24, %26 : vector<128x16xf32>
    %cst_50 = arith.constant 0.000000e+00 : f32
    %28 = vector.broadcast %cst_50 : f32 to vector<128x16xf32>
    %29 = arith.cmpf ogt, %27, %28 : vector<128x16xf32>
    %30 = math.exp %27 : vector<128x16xf32>
    %cst_51 = arith.constant 1.000000e+00 : f32
    %31 = vector.broadcast %cst_51 : f32 to vector<128x16xf32>
    %32 = arith.subf %30, %31 : vector<128x16xf32>
    %cst_52 = arith.constant 1.67326319 : f32
    %33 = vector.broadcast %cst_52 : f32 to vector<128x16xf32>
    %34 = arith.mulf %33, %32 : vector<128x16xf32>
    %35 = arith.select %29, %27, %34 : vector<128x16xi1>, vector<128x16xf32>
    %cst_53 = arith.constant 1.05070102 : f32
    %36 = vector.broadcast %cst_53 : f32 to vector<128x16xf32>
    %37 = arith.mulf %36, %35 : vector<128x16xf32>
    %c0_54 = arith.constant 0 : index
    %c0_55 = arith.constant 0 : index
    %38 = vector.load %arg4[%c0_54, %c0_55] : memref<1x16xf32, #tpu.memory_space<vmem>>, vector<1x16xf32>
    %cst_56 = arith.constant dense<0.000000e+00> : vector<1x128xf32>
    %39 = tpu.matmul %38, %37, %cst_56 {dimension_numbers = #tpu.dot_dimension_numbers<[1], [1], [0], [0], [0, 0, 1, 0], [], []>} : vector<1x16xf32>, vector<128x16xf32>, vector<1x128xf32> -> vector<1x128xf32>
    %c0_57 = arith.constant 0 : index
    %c0_58 = arith.constant 0 : index
    %40 = vector.load %arg5[%c0_57, %c0_58] : memref<1x1xf32, #tpu.memory_space<vmem>>, vector<1x1xf32>
    %41 = vector.broadcast %40 : vector<1x1xf32> to vector<1x128xf32>
    %42 = arith.addf %39, %41 : vector<1x128xf32>
    %43 = arith.negf %42 : vector<1x128xf32>
    %44 = math.exp %43 : vector<1x128xf32>
    %cst_59 = arith.constant 1.000000e+00 : f32
    %45 = vector.broadcast %cst_59 : f32 to vector<1x128xf32>
    %46 = arith.addf %45, %44 : vector<1x128xf32>
    %47 = arith.divf %45, %46 : vector<1x128xf32>
    %c0_60 = arith.constant 0 : index
    %c0_61 = arith.constant 0 : index
    %48 = vector.load %arg12[%c0_60, %c0_61] : memref<128x512xf32, #tpu.memory_space<vmem>>, vector<128x512xf32>
    %cst_62 = arith.constant dense<0.000000e+00> : vector<1x512xf32>
    %49 = tpu.matmul %47, %48, %cst_62 {dimension_numbers = #tpu.dot_dimension_numbers<[1], [0], [0], [1], [0, 0, 1, 1], [], []>} : vector<1x128xf32>, vector<128x512xf32>, vector<1x512xf32> -> vector<1x512xf32>
    %cst_63 = arith.constant 9.99999993E-9 : f32
    %cst_64 = arith.constant 1.000000e+00 : f32
    %50 = vector.broadcast %cst_63 : f32 to vector<1x512xf32>
    %51 = arith.maximumf %50, %49 : vector<1x512xf32>
    %52 = vector.broadcast %cst_64 : f32 to vector<1x512xf32>
    %53 = arith.minimumf %52, %51 : vector<1x512xf32>
    %c0_65 = arith.constant 0 : index
    %c0_66 = arith.constant 0 : index
    %54 = vector.load %arg15[%c0_65, %c0_66] : memref<1x512xf32, #tpu.memory_space<vmem>>, vector<1x512xf32>
    tpu.vector_store %arg15[%c0_65, %c0_66], %53 {strides = array<i32>} : memref<1x512xf32, #tpu.memory_space<vmem>>, vector<1x512xf32>,
    %55 = tpu.reciprocal %53 : vector<1x512xf32> -> vector<1x512xf32>
    %c0_67 = arith.constant 0 : index
    %c0_68 = arith.constant 0 : index
    %c0_69 = arith.constant 0 : index
    %c0_70 = arith.constant 0 : index
    %56 = vector.load %arg1[%c0_67, %c0_68, %c0_69, %c0_70] : memref<2x8x8x32xf32, #tpu.memory_space<vmem>>, vector<2x8x8x32xf32>
    %57 = vector.shape_cast %56 : vector<2x8x8x32xf32> to vector<2x64x32xf32>
    %cst_71 = arith.constant dense<0.000000e+00> : vector<2x32xf32>
    %58 = vector.multi_reduction <add>, %57, %cst_71 [1] : vector<2x64x32xf32> to vector<2x32xf32>
    %cst_72 = arith.constant 6.400000e+01 : f32
    %59 = vector.broadcast %cst_72 : f32 to vector<2x32xf32>
    %60 = arith.divf %58, %59 : vector<2x32xf32>
    %c0_73 = arith.constant 0 : index
    %c0_74 = arith.constant 0 : index
    %61 = vector.load %arg6[%c0_73, %c0_74] : memref<32x32xf32, #tpu.memory_space<vmem>>, vector<32x32xf32>
    %cst_75 = arith.constant dense<0.000000e+00> : vector<2x32xf32>
    %62 = tpu.matmul %60, %61, %cst_75 {dimension_numbers = #tpu.dot_dimension_numbers<[1], [0], [0], [1], [0, 0, 1, 1], [], []>} : vector<2x32xf32>, vector<32x32xf32>, vector<2x32xf32> -> vector<2x32xf32>
    %c0_76 = arith.constant 0 : index
    %c0_77 = arith.constant 0 : index
    %63 = vector.load %arg7[%c0_76, %c0_77] : memref<1x32xf32, #tpu.memory_space<vmem>>, vector<1x32xf32>
    %64 = vector.broadcast %63 : vector<1x32xf32> to vector<2x32xf32>
    %65 = arith.addf %62, %64 : vector<2x32xf32>
    %cst_78 = arith.constant 0.000000e+00 : f32
    %66 = vector.broadcast %cst_78 : f32 to vector<2x32xf32>
    %67 = arith.cmpf ogt, %65, %66 : vector<2x32xf32>
    %68 = math.exp %65 : vector<2x32xf32>
    %cst_79 = arith.constant 1.000000e+00 : f32
    %69 = vector.broadcast %cst_79 : f32 to vector<2x32xf32>
    %70 = arith.subf %68, %69 : vector<2x32xf32>
    %cst_80 = arith.constant 1.67326319 : f32
    %71 = vector.broadcast %cst_80 : f32 to vector<2x32xf32>
    %72 = arith.mulf %71, %70 : vector<2x32xf32>
    %73 = arith.select %67, %65, %72 : vector<2x32xi1>, vector<2x32xf32>
    %cst_81 = arith.constant 1.05070102 : f32
    %74 = vector.broadcast %cst_81 : f32 to vector<2x32xf32>
    %75 = arith.mulf %74, %73 : vector<2x32xf32>
    %c0_82 = arith.constant 0 : index
    %c0_83 = arith.constant 0 : index
    %76 = vector.load %arg8[%c0_82, %c0_83] : memref<32x32xf32, #tpu.memory_space<vmem>>, vector<32x32xf32>
    %cst_84 = arith.constant dense<0.000000e+00> : vector<2x32xf32>
    %77 = tpu.matmul %75, %76, %cst_84 {dimension_numbers = #tpu.dot_dimension_numbers<[1], [0], [0], [1], [0, 0, 1, 1], [], []>} : vector<2x32xf32>, vector<32x32xf32>, vector<2x32xf32> -> vector<2x32xf32>
    %c0_85 = arith.constant 0 : index
    %c0_86 = arith.constant 0 : index
    %78 = vector.load %arg9[%c0_85, %c0_86] : memref<1x32xf32, #tpu.memory_space<vmem>>, vector<1x32xf32>
    %79 = vector.broadcast %78 : vector<1x32xf32> to vector<2x32xf32>
    %80 = arith.addf %77, %79 : vector<2x32xf32>
    %cst_87 = arith.constant 0.000000e+00 : f32
    %81 = vector.broadcast %cst_87 : f32 to vector<2x32xf32>
    %82 = arith.cmpf ogt, %80, %81 : vector<2x32xf32>
    %83 = math.exp %80 : vector<2x32xf32>
    %cst_88 = arith.constant 1.000000e+00 : f32
    %84 = vector.broadcast %cst_88 : f32 to vector<2x32xf32>
    %85 = arith.subf %83, %84 : vector<2x32xf32>
    %cst_89 = arith.constant 1.67326319 : f32
    %86 = vector.broadcast %cst_89 : f32 to vector<2x32xf32>
    %87 = arith.mulf %86, %85 : vector<2x32xf32>
    %88 = arith.select %82, %80, %87 : vector<2x32xi1>, vector<2x32xf32>
    %cst_90 = arith.constant 1.05070102 : f32
    %89 = vector.broadcast %cst_90 : f32 to vector<2x32xf32>
    %90 = arith.mulf %89, %88 : vector<2x32xf32>
    %c0_91 = arith.constant 0 : index
    %c0_92 = arith.constant 0 : index
    %91 = vector.load %arg10[%c0_91, %c0_92] : memref<1x32xf32, #tpu.memory_space<vmem>>, vector<1x32xf32>
    %92 = vector.broadcast %91 : vector<1x32xf32> to vector<2x32xf32>
    %93 = arith.mulf %90, %92 : vector<2x32xf32>
    %cst_93 = arith.constant dense<0.000000e+00> : vector<2xf32>
    %94 = vector.multi_reduction <add>, %93, %cst_93 [1] : vector<2x32xf32> to vector<2xf32>
    %95 = vector.shape_cast %94 : vector<2xf32> to vector<2x1xf32>
    %c0_94 = arith.constant 0 : index
    %c0_95 = arith.constant 0 : index
    %96 = vector.load %arg11[%c0_94, %c0_95] : memref<1x1xf32, #tpu.memory_space<vmem>>, vector<1x1xf32>
    %97 = vector.broadcast %96 : vector<1x1xf32> to vector<2x1xf32>
    %98 = arith.addf %95, %97 : vector<2x1xf32>
    %99 = arith.negf %98 : vector<2x1xf32>
    %100 = math.exp %99 : vector<2x1xf32>
    %cst_96 = arith.constant 1.000000e+00 : f32
    %101 = vector.broadcast %cst_96 : f32 to vector<2x1xf32>
    %102 = arith.addf %101, %100 : vector<2x1xf32>
    %103 = arith.divf %101, %102 : vector<2x1xf32>
    %c0_97 = arith.constant 0 : index
    %c0_98 = arith.constant 0 : index
    %104 = vector.load %arg16[%c0_97, %c0_98] : memref<2x1xf32, #tpu.memory_space<vmem>>, vector<2x1xf32>
    tpu.vector_store %arg16[%c0_97, %c0_98], %103 {strides = array<i32>} : memref<2x1xf32, #tpu.memory_space<vmem>>, vector<2x1xf32>,
    %c0_99 = arith.constant 0 : index
    %c0_100 = arith.constant 0 : index
    %c0_101 = arith.constant 0 : index
    %105 = vector.load %arg13[%c0_99, %c0_100, %c0_101] : memref<2x3x256xf32, #tpu.memory_space<vmem>>, vector<1x3x256xf32>
    %106 = vector.shape_cast %105 : vector<1x3x256xf32> to vector<3x256xf32>
    %107 = vector.extract_strided_slice %53 {offsets = [0, 0], sizes = [1, 256], strides = [1, 1]} : vector<1x512xf32> to vector<1x256xf32>
    %108 = vector.extract_strided_slice %55 {offsets = [0, 0], sizes = [1, 256], strides = [1, 1]} : vector<1x512xf32> to vector<1x256xf32>
    %109 = vector.extract_strided_slice %103 {offsets = [0, 0], sizes = [1, 1], strides = [1, 1]} : vector<2x1xf32> to vector<1x1xf32>
    %cst_102 = arith.constant 1.000000e+00 : f32
    %110 = vector.broadcast %cst_102 : f32 to vector<1x256xf32>
    %111 = arith.subf %110, %107 : vector<1x256xf32>
    %112 = vector.broadcast %109 : vector<1x1xf32> to vector<1x256xf32>
    %113 = arith.mulf %112, %111 : vector<1x256xf32>
    %114 = vector.broadcast %113 : vector<1x256xf32> to vector<3x256xf32>
    %115 = arith.subf %106, %114 : vector<3x256xf32>
    %116 = vector.broadcast %108 : vector<1x256xf32> to vector<3x256xf32>
    %117 = arith.mulf %115, %116 : vector<3x256xf32>
    %cst_103 = arith.constant 0.000000e+00 : f32
    %cst_104 = arith.constant 1.000000e+00 : f32
    %118 = vector.broadcast %cst_103 : f32 to vector<3x256xf32>
    %119 = arith.maximumf %118, %117 : vector<3x256xf32>
    %120 = vector.broadcast %cst_104 : f32 to vector<3x256xf32>
    %121 = arith.minimumf %120, %119 : vector<3x256xf32>
    %c0_105 = arith.constant 0 : index
    %c0_106 = arith.constant 0 : index
    %c0_107 = arith.constant 0 : index
    %122 = vector.load %arg14[%c0_105, %c0_106, %c0_107] : memref<2x3x256xf32, #tpu.memory_space<vmem>>, vector<1x3x256xf32>
    %123 = vector.shape_cast %122 : vector<1x3x256xf32> to vector<3x256xf32>
    %124 = vector.shape_cast %121 : vector<3x256xf32> to vector<1x3x256xf32>
    tpu.vector_store %arg14[%c0_105, %c0_106, %c0_107], %124 {strides = array<i32>} : memref<2x3x256xf32, #tpu.memory_space<vmem>>, vector<1x3x256xf32>,
    %c1_108 = arith.constant 1 : index
    %c0_109 = arith.constant 0 : index
    %c0_110 = arith.constant 0 : index
    %125 = vector.load %arg13[%c1_108, %c0_109, %c0_110] : memref<2x3x256xf32, #tpu.memory_space<vmem>>, vector<1x3x256xf32>
    %126 = vector.shape_cast %125 : vector<1x3x256xf32> to vector<3x256xf32>
    %127 = vector.extract_strided_slice %53 {offsets = [0, 256], sizes = [1, 256], strides = [1, 1]} : vector<1x512xf32> to vector<1x256xf32>
    %128 = vector.extract_strided_slice %55 {offsets = [0, 256], sizes = [1, 256], strides = [1, 1]} : vector<1x512xf32> to vector<1x256xf32>
    %129 = vector.extract_strided_slice %103 {offsets = [1, 0], sizes = [1, 1], strides = [1, 1]} : vector<2x1xf32> to vector<1x1xf32>
    %cst_111 = arith.constant 1.000000e+00 : f32
    %130 = vector.broadcast %cst_111 : f32 to vector<1x256xf32>
    %131 = arith.subf %130, %127 : vector<1x256xf32>
    %132 = vector.broadcast %129 : vector<1x1xf32> to vector<1x256xf32>
    %133 = arith.mulf %132, %131 : vector<1x256xf32>
    %134 = vector.broadcast %133 : vector<1x256xf32> to vector<3x256xf32>
    %135 = arith.subf %126, %134 : vector<3x256xf32>
    %136 = vector.broadcast %128 : vector<1x256xf32> to vector<3x256xf32>
    %137 = arith.mulf %135, %136 : vector<3x256xf32>
    %cst_112 = arith.constant 0.000000e+00 : f32
    %cst_113 = arith.constant 1.000000e+00 : f32
    %138 = vector.broadcast %cst_112 : f32 to vector<3x256xf32>
    %139 = arith.maximumf %138, %137 : vector<3x256xf32>
    %140 = vector.broadcast %cst_113 : f32 to vector<3x256xf32>
    %141 = arith.minimumf %140, %139 : vector<3x256xf32>
    %c1_114 = arith.constant 1 : index
    %c0_115 = arith.constant 0 : index
    %c0_116 = arith.constant 0 : index
    %142 = vector.load %arg14[%c1_114, %c0_115, %c0_116] : memref<2x3x256xf32, #tpu.memory_space<vmem>>, vector<1x3x256xf32>
    %143 = vector.shape_cast %142 : vector<1x3x256xf32> to vector<3x256xf32>
    %144 = vector.shape_cast %141 : vector<3x256xf32> to vector<1x3x256xf32>
    tpu.vector_store %arg14[%c1_114, %c0_115, %c0_116], %144 {strides = array<i32>} : memref<2x3x256xf32, #tpu.memory_space<vmem>>, vector<1x3x256xf32>,
    return
  }
  func.func @transform_0(%arg0: i32) -> (i32, i32, i32, i32) {
    %c0_i32 = arith.constant 0 : i32
    %c0_i32_0 = arith.constant 0 : i32
    %c0_i32_1 = arith.constant 0 : i32
    %c0_i32_2 = arith.constant 0 : i32
    %c0_i32_3 = arith.constant 0 : i32
    return %c0_i32, %c0_i32_0, %c0_i32_1, %c0_i32_2 : i32, i32, i32, i32
  }
  func.func @transform_1(%arg0: i32) -> (i32, i32) {
    %c0_i32 = arith.constant 0 : i32
    %c0_i32_0 = arith.constant 0 : i32
    %c0_i32_1 = arith.constant 0 : i32
    return %c0_i32, %c0_i32_0 : i32, i32
  }
  func.func @transform_2(%arg0: i32) -> (i32, i32) {
    %c0_i32 = arith.constant 0 : i32
    %c0_i32_0 = arith.constant 0 : i32
    %c0_i32_1 = arith.constant 0 : i32
    return %c0_i32, %c0_i32_0 : i32, i32
  }
  func.func @transform_3(%arg0: i32) -> (i32, i32) {
    %c0_i32 = arith.constant 0 : i32
    %c0_i32_0 = arith.constant 0 : i32
    %c0_i32_1 = arith.constant 0 : i32
    return %c0_i32, %c0_i32_0 : i32, i32
  }
  func.func @transform_4(%arg0: i32) -> (i32, i32) {
    %c0_i32 = arith.constant 0 : i32
    %c0_i32_0 = arith.constant 0 : i32
    %c0_i32_1 = arith.constant 0 : i32
    return %c0_i32, %c0_i32_0 : i32, i32
  }
  func.func @transform_5(%arg0: i32) -> (i32, i32) {
    %c0_i32 = arith.constant 0 : i32
    %c0_i32_0 = arith.constant 0 : i32
    %c0_i32_1 = arith.constant 0 : i32
    return %c0_i32, %c0_i32_0 : i32, i32
  }
  func.func @transform_6(%arg0: i32) -> (i32, i32) {
    %c0_i32 = arith.constant 0 : i32
    %c0_i32_0 = arith.constant 0 : i32
    %c0_i32_1 = arith.constant 0 : i32
    return %c0_i32, %c0_i32_0 : i32, i32
  }
  func.func @transform_7(%arg0: i32) -> (i32, i32) {
    %c0_i32 = arith.constant 0 : i32
    %c0_i32_0 = arith.constant 0 : i32
    %c0_i32_1 = arith.constant 0 : i32
    return %c0_i32, %c0_i32_0 : i32, i32
  }
  func.func @transform_8(%arg0: i32) -> (i32, i32) {
    %c0_i32 = arith.constant 0 : i32
    %c0_i32_0 = arith.constant 0 : i32
    %c0_i32_1 = arith.constant 0 : i32
    return %c0_i32, %c0_i32_0 : i32, i32
  }
  func.func @transform_9(%arg0: i32) -> (i32, i32) {
    %c0_i32 = arith.constant 0 : i32
    %c0_i32_0 = arith.constant 0 : i32
    %c0_i32_1 = arith.constant 0 : i32
    return %c0_i32, %c0_i32_0 : i32, i32
  }
  func.func @transform_10(%arg0: i32) -> (i32, i32) {
    %c0_i32 = arith.constant 0 : i32
    %c0_i32_0 = arith.constant 0 : i32
    %c0_i32_1 = arith.constant 0 : i32
    return %c0_i32, %c0_i32_0 : i32, i32
  }
  func.func @transform_11(%arg0: i32) -> (i32, i32) {
    %c0_i32 = arith.constant 0 : i32
    %c0_i32_0 = arith.constant 0 : i32
    %c0_i32_1 = arith.constant 0 : i32
    return %c0_i32, %c0_i32_0 : i32, i32
  }
  func.func @transform_12(%arg0: i32) -> (i32, i32, i32) {
    %c0_i32 = arith.constant 0 : i32
    %c0_i32_0 = arith.constant 0 : i32
    %c0_i32_1 = arith.constant 0 : i32
    %c0_i32_2 = arith.constant 0 : i32
    return %c0_i32, %c0_i32_0, %c0_i32_1 : i32, i32, i32
  }
  func.func @transform_13(%arg0: i32) -> (i32, i32, i32) {
    %c0_i32 = arith.constant 0 : i32
    %c0_i32_0 = arith.constant 0 : i32
    %c0_i32_1 = arith.constant 0 : i32
    %c0_i32_2 = arith.constant 0 : i32
    return %c0_i32, %c0_i32_0, %c0_i32_1 : i32, i32, i32
  }
  func.func @transform_14(%arg0: i32) -> (i32, i32) {
    %c0_i32 = arith.constant 0 : i32
    %c0_i32_0 = arith.constant 0 : i32
    %c0_i32_1 = arith.constant 0 : i32
    return %c0_i32, %c0_i32_0 : i32, i32
  }
  func.func @transform_15(%arg0: i32) -> (i32, i32) {
    %c0_i32 = arith.constant 0 : i32
    %c0_i32_0 = arith.constant 0 : i32
    %c0_i32_1 = arith.constant 0 : i32
    return %c0_i32, %c0_i32_0 : i32, i32
  }
}

</mosaic_0001>

<llo_original>
// kernel: as_model_forward.1
$region0: #{as_model_forward.1}
  #allocation0 [shape = 'u32[]', space=smem, size = 0x4, offset = 0x4, fixed_abs, tag = 'smem constant byte address 0x4 - core index']
  #allocation1 [shape = 'u32[144,128]{1,0:T(1,128)}', space=vmem, size = 0x12000, scoped, tag = 'internal scratch']
  #allocation2 [shape = 'f32[2,10,10,32]{3,2,1,0:T(8,128)}', space=vmem, size = 0x28000, scoped, tag = 'scratch operand']
  #allocation3 [shape = 'f32[1,1]{1,0:T(1,128)S(1)}', space=vmem, size = 0x200, scoped, tag = 'scoped memory for as_model_forward.1']
  #allocation4 [shape = 'f32[1,1]{1,0:T(1,128)S(1)}', space=vmem, size = 0x200, scoped, tag = 'scoped memory for as_model_forward.1']
  %s0 = inlined_call_operand.vmem [shape: f32[2,8,8,32], index: 0, kind: input, shape index: {}]
  %s1 = inlined_call_operand.vmem [shape: f32[288,16], index: 1, kind: input, shape index: {}]
  %s2 = inlined_call_operand.vmem [shape: f32[1,16], index: 2, kind: input, shape index: {}]
  %s3 = inlined_call_operand.vmem [shape: f32[1,16], index: 3, kind: input, shape index: {}]
  %s4 = inlined_call_operand.<no memory space> [shape: f32[1,1], index: 4, kind: input, shape index: {}]
  %s5 = inlined_call_operand.vmem [shape: f32[32,32], index: 5, kind: input, shape index: {}]
  %s6 = inlined_call_operand.vmem [shape: f32[1,32], index: 6, kind: input, shape index: {}]
  %s7 = inlined_call_operand.vmem [shape: f32[32,32], index: 7, kind: input, shape index: {}]
  %s8 = inlined_call_operand.vmem [shape: f32[1,32], index: 8, kind: input, shape index: {}]
  %s9 = inlined_call_operand.vmem [shape: f32[1,32], index: 9, kind: input, shape index: {}]
  %s10 = inlined_call_operand.<no memory space> [shape: f32[1,1], index: 10, kind: input, shape index: {}]
  %s11 = inlined_call_operand.vmem [shape: f32[128,512], index: 11, kind: input, shape index: {}]
  %s12 = inlined_call_operand.vmem [shape: f32[2,3,256], index: 12, kind: input, shape index: {}]
  %s13 = inlined_call_operand.vmem [shape: f32[2,3,256], index: 13, kind: output, shape index: {0}]
  %s14 = inlined_call_operand.vmem [shape: f32[1,512], index: 14, kind: output, shape index: {1}]
  %s15 = inlined_call_operand.vmem [shape: f32[2,1], index: 15, kind: output, shape index: {2}]
  %16 = xla_tuple %s13, %s14, %s15
  %s17 = sld [smem:[#allocation0]]
  $region78: #{as_model_forward.1} parent=0
    _
  %s19 = ssub.s32 1, %s17
  %s20 = scalar_select 0, %s19, %s17
  %v21 = vstv %s4
  %22 = vst [vmem:[#allocation3] sm:$0x1] %v21
  %v23 = vstv %s10
  %24 = vst [vmem:[#allocation4] sm:$0x1] %v23
  // Predicated region
  $region2: #{as_model_forward.1} parent=0 // pred_check
    _
  $region3: #{as_model_forward.1} parent=0 // pred_check_branch
    %26 = sbr.rel (0) target = $region5
  $region4: #{as_model_forward.1} parent=0 // pred_region
    _
  $region5: #{as_model_forward.1} parent=0 // pred_fallthru
    _
  // Predicated region
  $region6: #{as_model_forward.1} parent=0 // pred_check
    _
  $region7: #{as_model_forward.1} parent=0 // pred_check_branch
    %28 = sbr.rel (0) target = $region9
  $region8: #{as_model_forward.1} parent=0 // pred_region
    _
  $region9: #{as_model_forward.1} parent=0 // pred_fallthru
    _
  // Predicated region
  $region10: #{as_model_forward.1} parent=0 // pred_check
    _
  $region11: #{as_model_forward.1} parent=0 // pred_check_branch
    %30 = sbr.rel (0) target = $region13
  $region12: #{as_model_forward.1} parent=0 // pred_region
    _
  $region13: #{as_model_forward.1} parent=0 // pred_fallthru
    _
  // Predicated region
  $region14: #{as_model_forward.1} parent=0 // pred_check
    _
  $region15: #{as_model_forward.1} parent=0 // pred_check_branch
    %32 = sbr.rel (0) target = $region17
  $region16: #{as_model_forward.1} parent=0 // pred_region
    _
  $region17: #{as_model_forward.1} parent=0 // pred_fallthru
    _
  // Predicated region
  $region18: #{as_model_forward.1} parent=0 // pred_check
    _
  $region19: #{as_model_forward.1} parent=0 // pred_check_branch
    %34 = sbr.rel (0) target = $region21
  $region20: #{as_model_forward.1} parent=0 // pred_region
    _
  $region21: #{as_model_forward.1} parent=0 // pred_fallthru
    _
  // Predicated region
  $region22: #{as_model_forward.1} parent=0 // pred_check
    _
  $region23: #{as_model_forward.1} parent=0 // pred_check_branch
    %36 = sbr.rel (0) target = $region25
  $region24: #{as_model_forward.1} parent=0 // pred_region
    _
  $region25: #{as_model_forward.1} parent=0 // pred_fallthru
    _
  // Predicated region
  $region26: #{as_model_forward.1} parent=0 // pred_check
    _
  $region27: #{as_model_forward.1} parent=0 // pred_check_branch
    %38 = sbr.rel (0) target = $region29
  $region28: #{as_model_forward.1} parent=0 // pred_region
    _
  $region29: #{as_model_forward.1} parent=0 // pred_fallthru
    _
  // Predicated region
  $region30: #{as_model_forward.1} parent=0 // pred_check
    _
  $region31: #{as_model_forward.1} parent=0 // pred_check_branch
    %40 = sbr.rel (0) target = $region33
  $region32: #{as_model_forward.1} parent=0 // pred_region
    _
  $region33: #{as_model_forward.1} parent=0 // pred_fallthru
    _
  // Predicated region
  $region34: #{as_model_forward.1} parent=0 // pred_check
    _
  $region35: #{as_model_forward.1} parent=0 // pred_check_branch
    %42 = sbr.rel (0) target = $region37
  $region36: #{as_model_forward.1} parent=0 // pred_region
    _
  $region37: #{as_model_forward.1} parent=0 // pred_fallthru
    _
  // Predicated region
  $region38: #{as_model_forward.1} parent=0 // pred_check
    _
  $region39: #{as_model_forward.1} parent=0 // pred_check_branch
    %44 = sbr.rel (0) target = $region41
  $region40: #{as_model_forward.1} parent=0 // pred_region
    _
  $region41: #{as_model_forward.1} parent=0 // pred_fallthru
    _
  // Predicated region
  $region42: #{as_model_forward.1} parent=0 // pred_check
    _
  $region43: #{as_model_forward.1} parent=0 // pred_check_branch
    %46 = sbr.rel (0) target = $region45
  $region44: #{as_model_forward.1} parent=0 // pred_region
    _
  $region45: #{as_model_forward.1} parent=0 // pred_fallthru
    _
  // Predicated region
  $region46: #{as_model_forward.1} parent=0 // pred_check
    _
  $region47: #{as_model_forward.1} parent=0 // pred_check_branch
    %48 = sbr.rel (0) target = $region49
  $region48: #{as_model_forward.1} parent=0 // pred_region
    _
  $region49: #{as_model_forward.1} parent=0 // pred_fallthru
    _
  // Predicated region
  $region50: #{as_model_forward.1} parent=0 // pred_check
    _
  $region51: #{as_model_forward.1} parent=0 // pred_check_branch
    %50 = sbr.rel (0) target = $region53
  $region52: #{as_model_forward.1} parent=0 // pred_region
    _
  $region53: #{as_model_forward.1} parent=0 // pred_fallthru
    _
  %vm51 = vcmask 261120
  %52 = vst.msk [vmem:[#allocation2] sm:$0xff] %vm51, 0.0
  %vm53 = vcmask 254976
  %54 = vst.msk [vmem:[#allocation2 + $0x8] sm:$0x3] %vm53, 0.0
  %55 = vst.msk [vmem:[#allocation2 + $0x10] sm:$0xff] %vm51, 0.0
  %56 = vst.msk [vmem:[#allocation2 + $0x18] sm:$0x3] %vm53, 0.0
  %57 = vst.msk [vmem:[#allocation2 + $0x20] sm:$0xff] %vm51, 0.0
  %58 = vst.msk [vmem:[#allocation2 + $0x28] sm:$0x3] %vm53, 0.0
  %59 = vst.msk [vmem:[#allocation2 + $0x30] sm:$0xff] %vm51, 0.0
  %60 = vst.msk [vmem:[#allocation2 + $0x38] sm:$0x3] %vm53, 0.0
  %61 = vst.msk [vmem:[#allocation2 + $0x40] sm:$0xff] %vm51, 0.0
  %62 = vst.msk [vmem:[#allocation2 + $0x48] sm:$0x3] %vm53, 0.0
  %63 = vst.msk [vmem:[#allocation2 + $0x50] sm:$0xff] %vm51, 0.0
  %64 = vst.msk [vmem:[#allocation2 + $0x58] sm:$0x3] %vm53, 0.0
  %65 = vst.msk [vmem:[#allocation2 + $0x60] sm:$0xff] %vm51, 0.0
  %66 = vst.msk [vmem:[#allocation2 + $0x68] sm:$0x3] %vm53, 0.0
  %67 = vst.msk [vmem:[#allocation2 + $0x70] sm:$0xff] %vm51, 0.0
  %68 = vst.msk [vmem:[#allocation2 + $0x78] sm:$0x3] %vm53, 0.0
  %69 = vst.msk [vmem:[#allocation2 + $0x80] sm:$0xff] %vm51, 0.0
  %70 = vst.msk [vmem:[#allocation2 + $0x88] sm:$0x3] %vm53, 0.0
  %71 = vst.msk [vmem:[#allocation2 + $0x90] sm:$0xff] %vm51, 0.0
  %72 = vst.msk [vmem:[#allocation2 + $0x98] sm:$0x3] %vm53, 0.0
  %73 = vst.msk [vmem:[#allocation2 + $0xa0] sm:$0xff] %vm51, 0.0
  %74 = vst.msk [vmem:[#allocation2 + $0xa8] sm:$0x3] %vm53, 0.0
  %75 = vst.msk [vmem:[#allocation2 + $0xb0] sm:$0xff] %vm51, 0.0
  %76 = vst.msk [vmem:[#allocation2 + $0xb8] sm:$0x3] %vm53, 0.0
  %77 = vst.msk [vmem:[#allocation2 + $0xc0] sm:$0xff] %vm51, 0.0
  %78 = vst.msk [vmem:[#allocation2 + $0xc8] sm:$0x3] %vm53, 0.0
  %79 = vst.msk [vmem:[#allocation2 + $0xd0] sm:$0xff] %vm51, 0.0
  %80 = vst.msk [vmem:[#allocation2 + $0xd8] sm:$0x3] %vm53, 0.0
  %81 = vst.msk [vmem:[#allocation2 + $0xe0] sm:$0xff] %vm51, 0.0
  %82 = vst.msk [vmem:[#allocation2 + $0xe8] sm:$0x3] %vm53, 0.0
  %83 = vst.msk [vmem:[#allocation2 + $0xf0] sm:$0xff] %vm51, 0.0
  %84 = vst.msk [vmem:[#allocation2 + $0xf8] sm:$0x3] %vm53, 0.0
  %85 = vst.msk [vmem:[#allocation2 + $0x100] sm:$0xff] %vm51, 0.0
  %86 = vst.msk [vmem:[#allocation2 + $0x108] sm:$0x3] %vm53, 0.0
  %87 = vst.msk [vmem:[#allocation2 + $0x110] sm:$0xff] %vm51, 0.0
  %88 = vst.msk [vmem:[#allocation2 + $0x118] sm:$0x3] %vm53, 0.0
  %89 = vst.msk [vmem:[#allocation2 + $0x120] sm:$0xff] %vm51, 0.0
  %90 = vst.msk [vmem:[#allocation2 + $0x128] sm:$0x3] %vm53, 0.0
  %91 = vst.msk [vmem:[#allocation2 + $0x130] sm:$0xff] %vm51, 0.0
  %92 = vst.msk [vmem:[#allocation2 + $0x138] sm:$0x3] %vm53, 0.0
  %v93 = vld [vmem:[%s0] sm:$0xff]
  %v94 = vld [vmem:[%s0 + $0x8] sm:$0xff]
  %v95 = vld [vmem:[%s0 + $0x10] sm:$0xff]
  %v96 = vld [vmem:[%s0 + $0x18] sm:$0xff]
  %v97 = vld [vmem:[%s0 + $0x20] sm:$0xff]
  %v98 = vld [vmem:[%s0 + $0x28] sm:$0xff]
  %v99 = vld [vmem:[%s0 + $0x30] sm:$0xff]
  %v100 = vld [vmem:[%s0 + $0x38] sm:$0xff]
  %v101 = vld [vmem:[%s0 + $0x40] sm:$0xff]
  %v102 = vld [vmem:[%s0 + $0x48] sm:$0xff]
  %v103 = vld [vmem:[%s0 + $0x50] sm:$0xff]
  %v104 = vld [vmem:[%s0 + $0x58] sm:$0xff]
  %v105 = vld [vmem:[%s0 + $0x60] sm:$0xff]
  %v106 = vld [vmem:[%s0 + $0x68] sm:$0xff]
  %v107 = vld [vmem:[%s0 + $0x70] sm:$0xff]
  %v108 = vld [vmem:[%s0 + $0x78] sm:$0xff]
  %s109 = scalar_lea.vmem [#allocation2], 16
  %110 = vst.msk [vmem:[%s109 + $0x1] sm:$0xff] %vm51, %v93
  %111 = vst.msk [vmem:[%s109 + $0x11] sm:$0xff] %vm51, %v94
  %112 = vst.msk [vmem:[%s109 + $0x21] sm:$0xff] %vm51, %v95
  %113 = vst.msk [vmem:[%s109 + $0x31] sm:$0xff] %vm51, %v96
  %114 = vst.msk [vmem:[%s109 + $0x41] sm:$0xff] %vm51, %v97
  %115 = vst.msk [vmem:[%s109 + $0x51] sm:$0xff] %vm51, %v98
  %116 = vst.msk [vmem:[%s109 + $0x61] sm:$0xff] %vm51, %v99
  %117 = vst.msk [vmem:[%s109 + $0x71] sm:$0xff] %vm51, %v100
  %118 = vst.msk [vmem:[%s109 + $0xa1] sm:$0xff] %vm51, %v101
  %119 = vst.msk [vmem:[%s109 + $0xb1] sm:$0xff] %vm51, %v102
  %120 = vst.msk [vmem:[%s109 + $0xc1] sm:$0xff] %vm51, %v103
  %121 = vst.msk [vmem:[%s109 + $0xd1] sm:$0xff] %vm51, %v104
  %122 = vst.msk [vmem:[%s109 + $0xe1] sm:$0xff] %vm51, %v105
  %123 = vst.msk [vmem:[%s109 + $0xf1] sm:$0xff] %vm51, %v106
  %124 = vst.msk [vmem:[%s109 + $0x101] sm:$0xff] %vm51, %v107
  %125 = vst.msk [vmem:[%s109 + $0x111] sm:$0xff] %vm51, %v108
  %v126 = vld [vmem:[#allocation2] sm:$0xff]
  %v127 = vld [vmem:[#allocation2 + $0x10] sm:$0xff]
  %v128 = vld [vmem:[#allocation2 + $0x20] sm:$0xff]
  %v129 = vld [vmem:[#allocation2 + $0x30] sm:$0xff]
  %v130 = vld [vmem:[#allocation2 + $0x40] sm:$0xff]
  %v131 = vld [vmem:[#allocation2 + $0x50] sm:$0xff]
  %v132 = vld [vmem:[#allocation2 + $0x60] sm:$0xff]
  %v133 = vld [vmem:[#allocation2 + $0x70] sm:$0xff]
  %v134 = vld [vmem:[#allocation2 + $0xa0] sm:$0xff]
  %v135 = vld [vmem:[#allocation2 + $0xb0] sm:$0xff]
  %v136 = vld [vmem:[#allocation2 + $0xc0] sm:$0xff]
  %v137 = vld [vmem:[#allocation2 + $0xd0] sm:$0xff]
  %v138 = vld [vmem:[#allocation2 + $0xe0] sm:$0xff]
  %v139 = vld [vmem:[#allocation2 + $0xf0] sm:$0xff]
  %v140 = vld [vmem:[#allocation2 + $0x100] sm:$0xff]
  %v141 = vld [vmem:[#allocation2 + $0x110] sm:$0xff]
  %v142 = vld [vmem:[#allocation2 + $0x1] sm:$0xff]
  %v143 = vld [vmem:[#allocation2 + $0x11] sm:$0xff]
  %v144 = vld [vmem:[#allocation2 + $0x21] sm:$0xff]
  %v145 = vld [vmem:[#allocation2 + $0x31] sm:$0xff]
  %v146 = vld [vmem:[#allocation2 + $0x41] sm:$0xff]
  %v147 = vld [vmem:[#allocation2 + $0x51] sm:$0xff]
  %v148 = vld [vmem:[#allocation2 + $0x61] sm:$0xff]
  %v149 = vld [vmem:[#allocation2 + $0x71] sm:$0xff]
  %v150 = vld [vmem:[#allocation2 + $0xa1] sm:$0xff]
  %v151 = vld [vmem:[#allocation2 + $0xb1] sm:$0xff]
  %v152 = vld [vmem:[#allocation2 + $0xc1] sm:$0xff]
  %v153 = vld [vmem:[#allocation2 + $0xd1] sm:$0xff]
  %v154 = vld [vmem:[#allocation2 + $0xe1] sm:$0xff]
  %v155 = vld [vmem:[#allocation2 + $0xf1] sm:$0xff]
  %v156 = vld [vmem:[#allocation2 + $0x101] sm:$0xff]
  %v157 = vld [vmem:[#allocation2 + $0x111] sm:$0xff]
  %v158 = vld [vmem:[#allocation2 + $0x2] sm:$0xff]
  %v159 = vld [vmem:[#allocation2 + $0x12] sm:$0xff]
  %v160 = vld [vmem:[#allocation2 + $0x22] sm:$0xff]
  %v161 = vld [vmem:[#allocation2 + $0x32] sm:$0xff]
  %v162 = vld [vmem:[#allocation2 + $0x42] sm:$0xff]
  %v163 = vld [vmem:[#allocation2 + $0x52] sm:$0xff]
  %v164 = vld [vmem:[#allocation2 + $0x62] sm:$0xff]
  %v165 = vld [vmem:[#allocation2 + $0x72] sm:$0xff]
  %v166 = vld [vmem:[#allocation2 + $0xa2] sm:$0xff]
  %v167 = vld [vmem:[#allocation2 + $0xb2] sm:$0xff]
  %v168 = vld [vmem:[#allocation2 + $0xc2] sm:$0xff]
  %v169 = vld [vmem:[#allocation2 + $0xd2] sm:$0xff]
  %v170 = vld [vmem:[#allocation2 + $0xe2] sm:$0xff]
  %v171 = vld [vmem:[#allocation2 + $0xf2] sm:$0xff]
  %v172 = vld [vmem:[#allocation2 + $0x102] sm:$0xff]
  %v173 = vld [vmem:[#allocation2 + $0x112] sm:$0xff]
  %v174 = vld [vmem:[%s109] sm:$0xff]
  %v175 = vld [vmem:[%s109 + $0x10] sm:$0xff]
  %v176 = vld [vmem:[%s109 + $0x20] sm:$0xff]
  %v177 = vld [vmem:[%s109 + $0x30] sm:$0xff]
  %v178 = vld [vmem:[%s109 + $0x40] sm:$0xff]
  %v179 = vld [vmem:[%s109 + $0x50] sm:$0xff]
  %v180 = vld [vmem:[%s109 + $0x60] sm:$0xff]
  %v181 = vld [vmem:[%s109 + $0x70] sm:$0xff]
  %v182 = vld [vmem:[%s109 + $0xa0] sm:$0xff]
  %v183 = vld [vmem:[%s109 + $0xb0] sm:$0xff]
  %v184 = vld [vmem:[%s109 + $0xc0] sm:$0xff]
  %v185 = vld [vmem:[%s109 + $0xd0] sm:$0xff]
  %v186 = vld [vmem:[%s109 + $0xe0] sm:$0xff]
  %v187 = vld [vmem:[%s109 + $0xf0] sm:$0xff]
  %v188 = vld [vmem:[%s109 + $0x100] sm:$0xff]
  %v189 = vld [vmem:[%s109 + $0x110] sm:$0xff]
  %v190 = vld [vmem:[%s109 + $0x1] sm:$0xff]
  %v191 = vld [vmem:[%s109 + $0x11] sm:$0xff]
  %v192 = vld [vmem:[%s109 + $0x21] sm:$0xff]
  %v193 = vld [vmem:[%s109 + $0x31] sm:$0xff]
  %v194 = vld [vmem:[%s109 + $0x41] sm:$0xff]
  %v195 = vld [vmem:[%s109 + $0x51] sm:$0xff]
  %v196 = vld [vmem:[%s109 + $0x61] sm:$0xff]
  %v197 = vld [vmem:[%s109 + $0x71] sm:$0xff]
  %v198 = vld [vmem:[%s109 + $0xa1] sm:$0xff]
  %v199 = vld [vmem:[%s109 + $0xb1] sm:$0xff]
  %v200 = vld [vmem:[%s109 + $0xc1] sm:$0xff]
  %v201 = vld [vmem:[%s109 + $0xd1] sm:$0xff]
  %v202 = vld [vmem:[%s109 + $0xe1] sm:$0xff]
  %v203 = vld [vmem:[%s109 + $0xf1] sm:$0xff]
  %v204 = vld [vmem:[%s109 + $0x101] sm:$0xff]
  %v205 = vld [vmem:[%s109 + $0x111] sm:$0xff]
  %v206 = vld [vmem:[%s109 + $0x2] sm:$0xff]
  %v207 = vld [vmem:[%s109 + $0x12] sm:$0xff]
  %v208 = vld [vmem:[%s109 + $0x22] sm:$0xff]
  %v209 = vld [vmem:[%s109 + $0x32] sm:$0xff]
  %v210 = vld [vmem:[%s109 + $0x42] sm:$0xff]
  %v211 = vld [vmem:[%s109 + $0x52] sm:$0xff]
  %v212 = vld [vmem:[%s109 + $0x62] sm:$0xff]
  %v213 = vld [vmem:[%s109 + $0x72] sm:$0xff]
  %v214 = vld [vmem:[%s109 + $0xa2] sm:$0xff]
  %v215 = vld [vmem:[%s109 + $0xb2] sm:$0xff]
  %v216 = vld [vmem:[%s109 + $0xc2] sm:$0xff]
  %v217 = vld [vmem:[%s109 + $0xd2] sm:$0xff]
  %v218 = vld [vmem:[%s109 + $0xe2] sm:$0xff]
  %v219 = vld [vmem:[%s109 + $0xf2] sm:$0xff]
  %v220 = vld [vmem:[%s109 + $0x102] sm:$0xff]
  %v221 = vld [vmem:[%s109 + $0x112] sm:$0xff]
  %s222 = scalar_lea.vmem [#allocation2], 32
  %v223 = vld [vmem:[%s222] sm:$0xff]
  %v224 = vld [vmem:[%s222 + $0x10] sm:$0xff]
  %v225 = vld [vmem:[%s222 + $0x20] sm:$0xff]
  %v226 = vld [vmem:[%s222 + $0x30] sm:$0xff]
  %v227 = vld [vmem:[%s222 + $0x40] sm:$0xff]
  %v228 = vld [vmem:[%s222 + $0x50] sm:$0xff]
  %v229 = vld [vmem:[%s222 + $0x60] sm:$0xff]
  %v230 = vld [vmem:[%s222 + $0x70] sm:$0xff]
  %v231 = vld [vmem:[%s222 + $0xa0] sm:$0xff]
  %v232 = vld [vmem:[%s222 + $0xb0] sm:$0xff]
  %v233 = vld [vmem:[%s222 + $0xc0] sm:$0xff]
  %v234 = vld [vmem:[%s222 + $0xd0] sm:$0xff]
  %v235 = vld [vmem:[%s222 + $0xe0] sm:$0xff]
  %v236 = vld [vmem:[%s222 + $0xf0] sm:$0xff]
  %v237 = vld [vmem:[%s222 + $0x100] sm:$0xff]
  %v238 = vld [vmem:[%s222 + $0x110] sm:$0xff]
  %v239 = vld [vmem:[%s222 + $0x1] sm:$0xff]
  %v240 = vld [vmem:[%s222 + $0x11] sm:$0xff]
  %v241 = vld [vmem:[%s222 + $0x21] sm:$0xff]
  %v242 = vld [vmem:[%s222 + $0x31] sm:$0xff]
  %v243 = vld [vmem:[%s222 + $0x41] sm:$0xff]
  %v244 = vld [vmem:[%s222 + $0x51] sm:$0xff]
  %v245 = vld [vmem:[%s222 + $0x61] sm:$0xff]
  %v246 = vld [vmem:[%s222 + $0x71] sm:$0xff]
  %v247 = vld [vmem:[%s222 + $0xa1] sm:$0xff]
  %v248 = vld [vmem:[%s222 + $0xb1] sm:$0xff]
  %v249 = vld [vmem:[%s222 + $0xc1] sm:$0xff]
  %v250 = vld [vmem:[%s222 + $0xd1] sm:$0xff]
  %v251 = vld [vmem:[%s222 + $0xe1] sm:$0xff]
  %v252 = vld [vmem:[%s222 + $0xf1] sm:$0xff]
  %v253 = vld [vmem:[%s222 + $0x101] sm:$0xff]
  %v254 = vld [vmem:[%s222 + $0x111] sm:$0xff]
  %v255 = vld [vmem:[%s222 + $0x2] sm:$0xff]
  %v256 = vld [vmem:[%s222 + $0x12] sm:$0xff]
  %v257 = vld [vmem:[%s222 + $0x22] sm:$0xff]
  %v258 = vld [vmem:[%s222 + $0x32] sm:$0xff]
  %v259 = vld [vmem:[%s222 + $0x42] sm:$0xff]
  %v260 = vld [vmem:[%s222 + $0x52] sm:$0xff]
  %v261 = vld [vmem:[%s222 + $0x62] sm:$0xff]
  %v262 = vld [vmem:[%s222 + $0x72] sm:$0xff]
  %v263 = vld [vmem:[%s222 + $0xa2] sm:$0xff]
  %v264 = vld [vmem:[%s222 + $0xb2] sm:$0xff]
  %v265 = vld [vmem:[%s222 + $0xc2] sm:$0xff]
  %v266 = vld [vmem:[%s222 + $0xd2] sm:$0xff]
  %v267 = vld [vmem:[%s222 + $0xe2] sm:$0xff]
  %v268 = vld [vmem:[%s222 + $0xf2] sm:$0xff]
  %v269 = vld [vmem:[%s222 + $0x102] sm:$0xff]
  %v270 = vld [vmem:[%s222 + $0x112] sm:$0xff]
  %287 = vrot.lane.b32.xlu0 %v142, 32
  %v288 = vpop.permute.xlu0 %287
  %289 = vrot.lane.b32.xlu0 %v143, 32
  %v290 = vpop.permute.xlu0 %289
  %291 = vrot.lane.b32.xlu0 %v144, 32
  %v292 = vpop.permute.xlu0 %291
  %293 = vrot.lane.b32.xlu0 %v145, 32
  %v294 = vpop.permute.xlu0 %293
  %295 = vrot.lane.b32.xlu0 %v146, 32
  %v296 = vpop.permute.xlu0 %295
  %297 = vrot.lane.b32.xlu0 %v147, 32
  %v298 = vpop.permute.xlu0 %297
  %299 = vrot.lane.b32.xlu0 %v148, 32
  %v300 = vpop.permute.xlu0 %299
  %301 = vrot.lane.b32.xlu0 %v149, 32
  %v302 = vpop.permute.xlu0 %301
  %303 = vrot.lane.b32.xlu0 %v150, 32
  %v304 = vpop.permute.xlu0 %303
  %305 = vrot.lane.b32.xlu0 %v151, 32
  %v306 = vpop.permute.xlu0 %305
  %307 = vrot.lane.b32.xlu0 %v152, 32
  %v308 = vpop.permute.xlu0 %307
  %309 = vrot.lane.b32.xlu0 %v153, 32
  %v310 = vpop.permute.xlu0 %309
  %311 = vrot.lane.b32.xlu0 %v154, 32
  %v312 = vpop.permute.xlu0 %311
  %313 = vrot.lane.b32.xlu0 %v155, 32
  %v314 = vpop.permute.xlu0 %313
  %315 = vrot.lane.b32.xlu0 %v156, 32
  %v316 = vpop.permute.xlu0 %315
  %317 = vrot.lane.b32.xlu0 %v157, 32
  %v318 = vpop.permute.xlu0 %317
  %351 = vrot.lane.b32.xlu0 %v158, 64
  %v352 = vpop.permute.xlu0 %351
  %353 = vrot.lane.b32.xlu0 %v159, 64
  %v354 = vpop.permute.xlu0 %353
  %355 = vrot.lane.b32.xlu0 %v160, 64
  %v356 = vpop.permute.xlu0 %355
  %357 = vrot.lane.b32.xlu0 %v161, 64
  %v358 = vpop.permute.xlu0 %357
  %359 = vrot.lane.b32.xlu0 %v162, 64
  %v360 = vpop.permute.xlu0 %359
  %361 = vrot.lane.b32.xlu0 %v163, 64
  %v362 = vpop.permute.xlu0 %361
  %363 = vrot.lane.b32.xlu0 %v164, 64
  %v364 = vpop.permute.xlu0 %363
  %365 = vrot.lane.b32.xlu0 %v165, 64
  %v366 = vpop.permute.xlu0 %365
  %367 = vrot.lane.b32.xlu0 %v166, 64
  %v368 = vpop.permute.xlu0 %367
  %369 = vrot.lane.b32.xlu0 %v167, 64
  %v370 = vpop.permute.xlu0 %369
  %371 = vrot.lane.b32.xlu0 %v168, 64
  %v372 = vpop.permute.xlu0 %371
  %373 = vrot.lane.b32.xlu0 %v169, 64
  %v374 = vpop.permute.xlu0 %373
  %375 = vrot.lane.b32.xlu0 %v170, 64
  %v376 = vpop.permute.xlu0 %375
  %377 = vrot.lane.b32.xlu0 %v171, 64
  %v378 = vpop.permute.xlu0 %377
  %379 = vrot.lane.b32.xlu0 %v172, 64
  %v380 = vpop.permute.xlu0 %379
  %381 = vrot.lane.b32.xlu0 %v173, 64
  %v382 = vpop.permute.xlu0 %381
  %415 = vrot.lane.b32.xlu0 %v174, 96
  %v416 = vpop.permute.xlu0 %415
  %417 = vrot.lane.b32.xlu0 %v175, 96
  %v418 = vpop.permute.xlu0 %417
  %419 = vrot.lane.b32.xlu0 %v176, 96
  %v420 = vpop.permute.xlu0 %419
  %421 = vrot.lane.b32.xlu0 %v177, 96
  %v422 = vpop.permute.xlu0 %421
  %423 = vrot.lane.b32.xlu0 %v178, 96
  %v424 = vpop.permute.xlu0 %423
  %425 = vrot.lane.b32.xlu0 %v179, 96
  %v426 = vpop.permute.xlu0 %425
  %427 = vrot.lane.b32.xlu0 %v180, 96
  %v428 = vpop.permute.xlu0 %427
  %429 = vrot.lane.b32.xlu0 %v181, 96
  %v430 = vpop.permute.xlu0 %429
  %431 = vrot.lane.b32.xlu0 %v182, 96
  %v432 = vpop.permute.xlu0 %431
  %433 = vrot.lane.b32.xlu0 %v183, 96
  %v434 = vpop.permute.xlu0 %433
  %435 = vrot.lane.b32.xlu0 %v184, 96
  %v436 = vpop.permute.xlu0 %435
  %437 = vrot.lane.b32.xlu0 %v185, 96
  %v438 = vpop.permute.xlu0 %437
  %439 = vrot.lane.b32.xlu0 %v186, 96
  %v440 = vpop.permute.xlu0 %439
  %441 = vrot.lane.b32.xlu0 %v187, 96
  %v442 = vpop.permute.xlu0 %441
  %443 = vrot.lane.b32.xlu0 %v188, 96
  %v444 = vpop.permute.xlu0 %443
  %445 = vrot.lane.b32.xlu0 %v189, 96
  %v446 = vpop.permute.xlu0 %445
  %479 = vrot.lane.b32.xlu0 %v206, 32
  %v480 = vpop.permute.xlu0 %479
  %481 = vrot.lane.b32.xlu0 %v207, 32
  %v482 = vpop.permute.xlu0 %481
  %483 = vrot.lane.b32.xlu0 %v208, 32
  %v484 = vpop.permute.xlu0 %483
  %485 = vrot.lane.b32.xlu0 %v209, 32
  %v486 = vpop.permute.xlu0 %485
  %487 = vrot.lane.b32.xlu0 %v210, 32
  %v488 = vpop.permute.xlu0 %487
  %489 = vrot.lane.b32.xlu0 %v211, 32
  %v490 = vpop.permute.xlu0 %489
  %491 = vrot.lane.b32.xlu0 %v212, 32
  %v492 = vpop.permute.xlu0 %491
  %493 = vrot.lane.b32.xlu0 %v213, 32
  %v494 = vpop.permute.xlu0 %493
  %495 = vrot.lane.b32.xlu0 %v214, 32
  %v496 = vpop.permute.xlu0 %495
  %497 = vrot.lane.b32.xlu0 %v215, 32
  %v498 = vpop.permute.xlu0 %497
  %499 = vrot.lane.b32.xlu0 %v216, 32
  %v500 = vpop.permute.xlu0 %499
  %501 = vrot.lane.b32.xlu0 %v217, 32
  %v502 = vpop.permute.xlu0 %501
  %503 = vrot.lane.b32.xlu0 %v218, 32
  %v504 = vpop.permute.xlu0 %503
  %505 = vrot.lane.b32.xlu0 %v219, 32
  %v506 = vpop.permute.xlu0 %505
  %507 = vrot.lane.b32.xlu0 %v220, 32
  %v508 = vpop.permute.xlu0 %507
  %509 = vrot.lane.b32.xlu0 %v221, 32
  %v510 = vpop.permute.xlu0 %509
  %543 = vrot.lane.b32.xlu0 %v223, 64
  %v544 = vpop.permute.xlu0 %543
  %545 = vrot.lane.b32.xlu0 %v224, 64
  %v546 = vpop.permute.xlu0 %545
  %547 = vrot.lane.b32.xlu0 %v225, 64
  %v548 = vpop.permute.xlu0 %547
  %549 = vrot.lane.b32.xlu0 %v226, 64
  %v550 = vpop.permute.xlu0 %549
  %551 = vrot.lane.b32.xlu0 %v227, 64
  %v552 = vpop.permute.xlu0 %551
  %553 = vrot.lane.b32.xlu0 %v228, 64
  %v554 = vpop.permute.xlu0 %553
  %555 = vrot.lane.b32.xlu0 %v229, 64
  %v556 = vpop.permute.xlu0 %555
  %557 = vrot.lane.b32.xlu0 %v230, 64
  %v558 = vpop.permute.xlu0 %557
  %559 = vrot.lane.b32.xlu0 %v231, 64
  %v560 = vpop.permute.xlu0 %559
  %561 = vrot.lane.b32.xlu0 %v232, 64
  %v562 = vpop.permute.xlu0 %561
  %563 = vrot.lane.b32.xlu0 %v233, 64
  %v564 = vpop.permute.xlu0 %563
  %565 = vrot.lane.b32.xlu0 %v234, 64
  %v566 = vpop.permute.xlu0 %565
  %567 = vrot.lane.b32.xlu0 %v235, 64
  %v568 = vpop.permute.xlu0 %567
  %569 = vrot.lane.b32.xlu0 %v236, 64
  %v570 = vpop.permute.xlu0 %569
  %571 = vrot.lane.b32.xlu0 %v237, 64
  %v572 = vpop.permute.xlu0 %571
  %573 = vrot.lane.b32.xlu0 %v238, 64
  %v574 = vpop.permute.xlu0 %573
  %607 = vrot.lane.b32.xlu0 %v239, 96
  %v608 = vpop.permute.xlu0 %607
  %609 = vrot.lane.b32.xlu0 %v240, 96
  %v610 = vpop.permute.xlu0 %609
  %611 = vrot.lane.b32.xlu0 %v241, 96
  %v612 = vpop.permute.xlu0 %611
  %613 = vrot.lane.b32.xlu0 %v242, 96
  %v614 = vpop.permute.xlu0 %613
  %615 = vrot.lane.b32.xlu0 %v243, 96
  %v616 = vpop.permute.xlu0 %615
  %617 = vrot.lane.b32.xlu0 %v244, 96
  %v618 = vpop.permute.xlu0 %617
  %619 = vrot.lane.b32.xlu0 %v245, 96
  %v620 = vpop.permute.xlu0 %619
  %621 = vrot.lane.b32.xlu0 %v246, 96
  %v622 = vpop.permute.xlu0 %621
  %623 = vrot.lane.b32.xlu0 %v247, 96
  %v624 = vpop.permute.xlu0 %623
  %625 = vrot.lane.b32.xlu0 %v248, 96
  %v626 = vpop.permute.xlu0 %625
  %627 = vrot.lane.b32.xlu0 %v249, 96
  %v628 = vpop.permute.xlu0 %627
  %629 = vrot.lane.b32.xlu0 %v250, 96
  %v630 = vpop.permute.xlu0 %629
  %631 = vrot.lane.b32.xlu0 %v251, 96
  %v632 = vpop.permute.xlu0 %631
  %633 = vrot.lane.b32.xlu0 %v252, 96
  %v634 = vpop.permute.xlu0 %633
  %635 = vrot.lane.b32.xlu0 %v253, 96
  %v636 = vpop.permute.xlu0 %635
  %637 = vrot.lane.b32.xlu0 %v254, 96
  %v638 = vpop.permute.xlu0 %637
  %v655 = vsel %vm51, %v126, %v288
  %v656 = vsel %vm51, %v127, %v290
  %v657 = vsel %vm51, %v128, %v292
  %v658 = vsel %vm51, %v129, %v294
  %v659 = vsel %vm51, %v130, %v296
  %v660 = vsel %vm51, %v131, %v298
  %v661 = vsel %vm51, %v132, %v300
  %v662 = vsel %vm51, %v133, %v302
  %v663 = vsel %vm51, %v134, %v304
  %v664 = vsel %vm51, %v135, %v306
  %v665 = vsel %vm51, %v136, %v308
  %v666 = vsel %vm51, %v137, %v310
  %v667 = vsel %vm51, %v138, %v312
  %v668 = vsel %vm51, %v139, %v314
  %v669 = vsel %vm51, %v140, %v316
  %v670 = vsel %vm51, %v141, %v318
  %vm671 = vcmask 523264
  %v672 = vsel %vm671, %v655, %v352
  %v673 = vsel %vm671, %v656, %v354
  %v674 = vsel %vm671, %v657, %v356
  %v675 = vsel %vm671, %v658, %v358
  %v676 = vsel %vm671, %v659, %v360
  %v677 = vsel %vm671, %v660, %v362
  %v678 = vsel %vm671, %v661, %v364
  %v679 = vsel %vm671, %v662, %v366
  %v680 = vsel %vm671, %v663, %v368
  %v681 = vsel %vm671, %v664, %v370
  %v682 = vsel %vm671, %v665, %v372
  %v683 = vsel %vm671, %v666, %v374
  %v684 = vsel %vm671, %v667, %v376
  %v685 = vsel %vm671, %v668, %v378
  %v686 = vsel %vm671, %v669, %v380
  %v687 = vsel %vm671, %v670, %v382
  %vm688 = vcmask 785408
  %v689 = vsel %vm688, %v672, %v416
  %v690 = vsel %vm688, %v673, %v418
  %v691 = vsel %vm688, %v674, %v420
  %v692 = vsel %vm688, %v675, %v422
  %v693 = vsel %vm688, %v676, %v424
  %v694 = vsel %vm688, %v677, %v426
  %v695 = vsel %vm688, %v678, %v428
  %v696 = vsel %vm688, %v679, %v430
  %v697 = vsel %vm688, %v680, %v432
  %v698 = vsel %vm688, %v681, %v434
  %v699 = vsel %vm688, %v682, %v436
  %v700 = vsel %vm688, %v683, %v438
  %v701 = vsel %vm688, %v684, %v440
  %v702 = vsel %vm688, %v685, %v442
  %v703 = vsel %vm688, %v686, %v444
  %v704 = vsel %vm688, %v687, %v446
  %v705 = vsel %vm51, %v190, %v480
  %v706 = vsel %vm51, %v191, %v482
  %v707 = vsel %vm51, %v192, %v484
  %v708 = vsel %vm51, %v193, %v486
  %v709 = vsel %vm51, %v194, %v488
  %v710 = vsel %vm51, %v195, %v490
  %v711 = vsel %vm51, %v196, %v492
  %v712 = vsel %vm51, %v197, %v494
  %v713 = vsel %vm51, %v198, %v496
  %v714 = vsel %vm51, %v199, %v498
  %v715 = vsel %vm51, %v200, %v500
  %v716 = vsel %vm51, %v201, %v502
  %v717 = vsel %vm51, %v202, %v504
  %v718 = vsel %vm51, %v203, %v506
  %v719 = vsel %vm51, %v204, %v508
  %v720 = vsel %vm51, %v205, %v510
  %v721 = vsel %vm671, %v705, %v544
  %v722 = vsel %vm671, %v706, %v546
  %v723 = vsel %vm671, %v707, %v548
  %v724 = vsel %vm671, %v708, %v550
  %v725 = vsel %vm671, %v709, %v552
  %v726 = vsel %vm671, %v710, %v554
  %v727 = vsel %vm671, %v711, %v556
  %v728 = vsel %vm671, %v712, %v558
  %v729 = vsel %vm671, %v713, %v560
  %v730 = vsel %vm671, %v714, %v562
  %v731 = vsel %vm671, %v715, %v564
  %v732 = vsel %vm671, %v716, %v566
  %v733 = vsel %vm671, %v717, %v568
  %v734 = vsel %vm671, %v718, %v570
  %v735 = vsel %vm671, %v719, %v572
  %v736 = vsel %vm671, %v720, %v574
  %v737 = vsel %vm688, %v721, %v608
  %v738 = vsel %vm688, %v722, %v610
  %v739 = vsel %vm688, %v723, %v612
  %v740 = vsel %vm688, %v724, %v614
  %v741 = vsel %vm688, %v725, %v616
  %v742 = vsel %vm688, %v726, %v618
  %v743 = vsel %vm688, %v727, %v620
  %v744 = vsel %vm688, %v728, %v622
  %v745 = vsel %vm688, %v729, %v624
  %v746 = vsel %vm688, %v730, %v626
  %v747 = vsel %vm688, %v731, %v628
  %v748 = vsel %vm688, %v732, %v630
  %v749 = vsel %vm688, %v733, %v632
  %v750 = vsel %vm688, %v734, %v634
  %v751 = vsel %vm688, %v735, %v636
  %v752 = vsel %vm688, %v736, %v638
  %v753 = vld [vmem:[%s1] sm:$0xff]
  %v754 = vld [vmem:[%s1 + $0x8] sm:$0xff]
  %v755 = vld [vmem:[%s1 + $0x10] sm:$0xff]
  %v756 = vld [vmem:[%s1 + $0x18] sm:$0xff]
  %v757 = vld [vmem:[%s1 + $0x20] sm:$0xff]
  %v758 = vld [vmem:[%s1 + $0x28] sm:$0xff]
  %v759 = vld [vmem:[%s1 + $0x30] sm:$0xff]
  %v760 = vld [vmem:[%s1 + $0x38] sm:$0xff]
  %v761 = vld [vmem:[%s1 + $0x40] sm:$0xff]
  %v762 = vld [vmem:[%s1 + $0x48] sm:$0xff]
  %v763 = vld [vmem:[%s1 + $0x50] sm:$0xff]
  %v764 = vld [vmem:[%s1 + $0x58] sm:$0xff]
  %v765 = vld [vmem:[%s1 + $0x60] sm:$0xff]
  %v766 = vld [vmem:[%s1 + $0x68] sm:$0xff]
  %v767 = vld [vmem:[%s1 + $0x70] sm:$0xff]
  %v768 = vld [vmem:[%s1 + $0x78] sm:$0xff]
  %v769 = vld [vmem:[%s1 + $0x80] sm:$0xff]
  %v770 = vld [vmem:[%s1 + $0x88] sm:$0xff]
  %v771 = vld [vmem:[%s1 + $0x90] sm:$0xff]
  %v772 = vld [vmem:[%s1 + $0x98] sm:$0xff]
  %v773 = vld [vmem:[%s1 + $0xa0] sm:$0xff]
  %v774 = vld [vmem:[%s1 + $0xa8] sm:$0xff]
  %v775 = vld [vmem:[%s1 + $0xb0] sm:$0xff]
  %v776 = vld [vmem:[%s1 + $0xb8] sm:$0xff]
  %v777 = vld [vmem:[%s1 + $0xc0] sm:$0xff]
  %v778 = vld [vmem:[%s1 + $0xc8] sm:$0xff]
  %v779 = vld [vmem:[%s1 + $0xd0] sm:$0xff]
  %v780 = vld [vmem:[%s1 + $0xd8] sm:$0xff]
  %v781 = vld [vmem:[%s1 + $0xe0] sm:$0xff]
  %v782 = vld [vmem:[%s1 + $0xe8] sm:$0xff]
  %v783 = vld [vmem:[%s1 + $0xf0] sm:$0xff]
  %v784 = vld [vmem:[%s1 + $0xf8] sm:$0xff]
  %v785 = vld [vmem:[%s1 + $0x100] sm:$0xff]
  %v786 = vld [vmem:[%s1 + $0x108] sm:$0xff]
  %v787 = vld [vmem:[%s1 + $0x110] sm:$0xff]
  %v788 = vld [vmem:[%s1 + $0x118] sm:$0xff]
  %v789 = vld [vmem:[%s2] sm:$0x1]
  %v791 = vlaneseq
  %v792 = vshrl.u32 %v791, 7
  %v793 = vsub.s32 0, %v792
  %v794 = vrot.slane %v789, %v793
  %v797 = vsel %vm51, %v255, 0
  %v800 = vsel %vm51, %v256, 0
  %v803 = vsel %vm51, %v257, 0
  %v806 = vsel %vm51, %v258, 0
  %v809 = vsel %vm51, %v259, 0
  %v812 = vsel %vm51, %v260, 0
  %v815 = vsel %vm51, %v261, 0
  %v818 = vsel %vm51, %v262, 0
  %v821 = vsel %vm51, %v263, 0
  %v824 = vsel %vm51, %v264, 0
  %v827 = vsel %vm51, %v265, 0
  %v830 = vsel %vm51, %v266, 0
  %v833 = vsel %vm51, %v267, 0
  %v836 = vsel %vm51, %v268, 0
  %v839 = vsel %vm51, %v269, 0
  %v842 = vsel %vm51, %v270, 0
  %844 = vmatprep.subr.mxu0 0.0
  %845 = vmatpush1.msra.mxu0 %v768
  %846 = vmatprep.subr.mxu0 0.0
  %847 = vmatpush1.msra.mxu0 %v767
  %848 = vmatprep.subr.mxu0 0.0
  %849 = vmatpush1.msra.mxu0 %v766
  %850 = vmatprep.subr.mxu0 0.0
  %851 = vmatpush1.msra.mxu0 %v765
  %852 = vmatprep.subr.mxu0 0.0
  %853 = vmatpush1.msra.mxu0 %v764
  %854 = vmatprep.subr.mxu0 0.0
  %855 = vmatpush1.msra.mxu0 %v763
  %856 = vmatprep.subr.mxu0 0.0
  %857 = vmatpush1.msra.mxu0 %v762
  %858 = vmatprep.subr.mxu0 0.0
  %859 = vmatpush1.msra.mxu0 %v761
  %860 = vmatprep.subr.mxu0 0.0
  %861 = vmatpush1.msra.mxu0 %v760
  %862 = vmatprep.subr.mxu0 0.0
  %863 = vmatpush1.msra.mxu0 %v759
  %864 = vmatprep.subr.mxu0 0.0
  %865 = vmatpush1.msra.mxu0 %v758
  %866 = vmatprep.subr.mxu0 0.0
  %867 = vmatpush1.msra.mxu0 %v757
  %868 = vmatprep.subr.mxu0 0.0
  %869 = vmatpush1.msra.mxu0 %v756
  %870 = vmatprep.subr.mxu0 0.0
  %871 = vmatpush1.msra.mxu0 %v755
  %872 = vmatprep.subr.mxu0 0.0
  %873 = vmatpush1.msra.mxu0 %v754
  %874 = vmatprep.subr.mxu0 0.0
  %875 = vmatpush1.msra.mxu0 %v753
  %876 = vmatprep.subr.mxu0 0.0
  %877 = vmatpush2.msra.mxu0 %v784
  %878 = vmatprep.subr.mxu0 0.0
  %879 = vmatpush2.msra.mxu0 %v783
  %880 = vmatprep.subr.mxu0 0.0
  %881 = vmatpush2.msra.mxu0 %v782
  %882 = vmatprep.subr.mxu0 0.0
  %883 = vmatpush2.msra.mxu0 %v781
  %884 = vmatprep.subr.mxu0 0.0
  %885 = vmatpush2.msra.mxu0 %v780
  %886 = vmatprep.subr.mxu0 0.0
  %887 = vmatpush2.msra.mxu0 %v779
  %888 = vmatprep.subr.mxu0 0.0
  %889 = vmatpush2.msra.mxu0 %v778
  %890 = vmatprep.subr.mxu0 0.0
  %891 = vmatpush2.msra.mxu0 %v777
  %892 = vmatprep.subr.mxu0 0.0
  %893 = vmatpush2.msra.mxu0 %v776
  %894 = vmatprep.subr.mxu0 0.0
  %895 = vmatpush2.msra.mxu0 %v775
  %896 = vmatprep.subr.mxu0 0.0
  %897 = vmatpush2.msra.mxu0 %v774
  %898 = vmatprep.subr.mxu0 0.0
  %899 = vmatpush2.msra.mxu0 %v773
  %900 = vmatprep.subr.mxu0 0.0
  %901 = vmatpush2.msra.mxu0 %v772
  %902 = vmatprep.subr.mxu0 0.0
  %903 = vmatpush2.msra.mxu0 %v771
  %904 = vmatprep.subr.mxu0 0.0
  %905 = vmatpush2.msra.mxu0 %v770
  %906 = vmatprep.subr.mxu0 0.0
  %907 = vmatpush2.msra.mxu0 %v769
  %908 = vmatprep.mubr.f32.mxu0 %v737
  %909 = vmatmul.mubr.f32.gmra.mxu0 %v689
  %v910 = vpop.f32.mrf.mxu0
  %v911 = vadd.f32 %v794, %v910
  %v912 = vpop.f32.mrf.mxu0
  %913 = vmatprep.mubr.f32.mxu0 %v738
  %914 = vmatmul.mubr.f32.gmra.mxu0 %v690
  %v915 = vpop.f32.mrf.mxu0
  %v916 = vadd.f32 %v794, %v915
  %v917 = vpop.f32.mrf.mxu0
  %918 = vmatprep.mubr.f32.mxu0 %v739
  %919 = vmatmul.mubr.f32.gmra.mxu0 %v691
  %v920 = vpop.f32.mrf.mxu0
  %v921 = vadd.f32 %v794, %v920
  %v922 = vpop.f32.mrf.mxu0
  %923 = vmatprep.mubr.f32.mxu0 %v740
  %924 = vmatmul.mubr.f32.gmra.mxu0 %v692
  %v925 = vpop.f32.mrf.mxu0
  %v926 = vadd.f32 %v794, %v925
  %v927 = vpop.f32.mrf.mxu0
  %928 = vmatprep.mubr.f32.mxu0 %v741
  %929 = vmatmul.mubr.f32.gmra.mxu0 %v693
  %v930 = vpop.f32.mrf.mxu0
  %v931 = vadd.f32 %v794, %v930
  %v932 = vpop.f32.mrf.mxu0
  %933 = vmatprep.mubr.f32.mxu0 %v742
  %934 = vmatmul.mubr.f32.gmra.mxu0 %v694
  %v935 = vpop.f32.mrf.mxu0
  %v936 = vadd.f32 %v794, %v935
  %v937 = vpop.f32.mrf.mxu0
  %938 = vmatprep.mubr.f32.mxu0 %v743
  %939 = vmatmul.mubr.f32.gmra.mxu0 %v695
  %v940 = vpop.f32.mrf.mxu0
  %v941 = vadd.f32 %v794, %v940
  %v942 = vpop.f32.mrf.mxu0
  %943 = vmatprep.mubr.f32.mxu0 %v744
  %944 = vmatmul.mubr.f32.gmra.mxu0 %v696
  %v945 = vpop.f32.mrf.mxu0
  %v946 = vadd.f32 %v794, %v945
  %v947 = vpop.f32.mrf.mxu0
  %948 = vmatprep.mubr.f32.mxu0 %v745
  %949 = vmatmul.mubr.f32.gmra.mxu0 %v697
  %v950 = vpop.f32.mrf.mxu0
  %v951 = vadd.f32 %v794, %v950
  %v952 = vpop.f32.mrf.mxu0
  %953 = vmatprep.mubr.f32.mxu0 %v746
  %954 = vmatmul.mubr.f32.gmra.mxu0 %v698
  %v955 = vpop.f32.mrf.mxu0
  %v956 = vadd.f32 %v794, %v955
  %v957 = vpop.f32.mrf.mxu0
  %958 = vmatprep.mubr.f32.mxu0 %v747
  %959 = vmatmul.mubr.f32.gmra.mxu0 %v699
  %v960 = vpop.f32.mrf.mxu0
  %v961 = vadd.f32 %v794, %v960
  %v962 = vpop.f32.mrf.mxu0
  %963 = vmatprep.mubr.f32.mxu0 %v748
  %964 = vmatmul.mubr.f32.gmra.mxu0 %v700
  %v965 = vpop.f32.mrf.mxu0
  %v966 = vadd.f32 %v794, %v965
  %v967 = vpop.f32.mrf.mxu0
  %968 = vmatprep.mubr.f32.mxu0 %v749
  %969 = vmatmul.mubr.f32.gmra.mxu0 %v701
  %v970 = vpop.f32.mrf.mxu0
  %v971 = vadd.f32 %v794, %v970
  %v972 = vpop.f32.mrf.mxu0
  %973 = vmatprep.mubr.f32.mxu0 %v750
  %974 = vmatmul.mubr.f32.gmra.mxu0 %v702
  %v975 = vpop.f32.mrf.mxu0
  %v976 = vadd.f32 %v794, %v975
  %v977 = vpop.f32.mrf.mxu0
  %978 = vmatprep.mubr.f32.mxu0 %v751
  %979 = vmatmul.mubr.f32.gmra.mxu0 %v703
  %v980 = vpop.f32.mrf.mxu0
  %v981 = vadd.f32 %v794, %v980
  %v982 = vpop.f32.mrf.mxu0
  %983 = vmatprep.mubr.f32.mxu0 %v752
  %984 = vmatmul.mubr.f32.gmra.mxu0 %v704
  %v985 = vpop.f32.mrf.mxu0
  %v986 = vadd.f32 %v794, %v985
  %v987 = vpop.f32.mrf.mxu0
  %988 = vdwg.mxu0
  %989 = vmatprep.subr.mxu0 0.0
  %990 = vmatpush1.msra.mxu0 0.0
  %991 = vmatprep.subr.mxu0 0.0
  %992 = vmatpush1.msra.mxu0 0.0
  %993 = vmatprep.subr.mxu0 0.0
  %994 = vmatpush1.msra.mxu0 0.0
  %995 = vmatprep.subr.mxu0 0.0
  %996 = vmatpush1.msra.mxu0 0.0
  %997 = vmatprep.subr.mxu0 0.0
  %998 = vmatpush1.msra.mxu0 0.0
  %999 = vmatprep.subr.mxu0 0.0
  %1000 = vmatpush1.msra.mxu0 0.0
  %1001 = vmatprep.subr.mxu0 0.0
  %1002 = vmatpush1.msra.mxu0 0.0
  %1003 = vmatprep.subr.mxu0 0.0
  %1004 = vmatpush1.msra.mxu0 0.0
  %1005 = vmatprep.subr.mxu0 0.0
  %1006 = vmatpush1.msra.mxu0 0.0
  %1007 = vmatprep.subr.mxu0 0.0
  %1008 = vmatpush1.msra.mxu0 0.0
  %1009 = vmatprep.subr.mxu0 0.0
  %1010 = vmatpush1.msra.mxu0 0.0
  %1011 = vmatprep.subr.mxu0 0.0
  %1012 = vmatpush1.msra.mxu0 0.0
  %1013 = vmatprep.subr.mxu0 0.0
  %1014 = vmatpush1.msra.mxu0 %v788
  %1015 = vmatprep.subr.mxu0 0.0
  %1016 = vmatpush1.msra.mxu0 %v787
  %1017 = vmatprep.subr.mxu0 0.0
  %1018 = vmatpush1.msra.mxu0 %v786
  %1019 = vmatprep.subr.mxu0 0.0
  %1020 = vmatpush1.msra.mxu0 %v785
  %1021 = vmatprep.subr.mxu0 0.0
  %1022 = vmatpush2.msra.mxu0 0.0
  %1023 = vmatprep.subr.mxu0 0.0
  %1024 = vmatpush2.msra.mxu0 0.0
  %1025 = vmatprep.subr.mxu0 0.0
  %1026 = vmatpush2.msra.mxu0 0.0
  %1027 = vmatprep.subr.mxu0 0.0
  %1028 = vmatpush2.msra.mxu0 0.0
  %1029 = vmatprep.subr.mxu0 0.0
  %1030 = vmatpush2.msra.mxu0 0.0
  %1031 = vmatprep.subr.mxu0 0.0
  %1032 = vmatpush2.msra.mxu0 0.0
  %1033 = vmatprep.subr.mxu0 0.0
  %1034 = vmatpush2.msra.mxu0 0.0
  %1035 = vmatprep.subr.mxu0 0.0
  %1036 = vmatpush2.msra.mxu0 0.0
  %1037 = vmatprep.subr.mxu0 0.0
  %1038 = vmatpush2.msra.mxu0 0.0
  %1039 = vmatprep.subr.mxu0 0.0
  %1040 = vmatpush2.msra.mxu0 0.0
  %1041 = vmatprep.subr.mxu0 0.0
  %1042 = vmatpush2.msra.mxu0 0.0
  %1043 = vmatprep.subr.mxu0 0.0
  %1044 = vmatpush2.msra.mxu0 0.0
  %1045 = vmatprep.subr.mxu0 0.0
  %1046 = vmatpush2.msra.mxu0 0.0
  %1047 = vmatprep.subr.mxu0 0.0
  %1048 = vmatpush2.msra.mxu0 0.0
  %1049 = vmatprep.subr.mxu0 0.0
  %1050 = vmatpush2.msra.mxu0 0.0
  %1051 = vmatprep.subr.mxu0 0.0
  %1052 = vmatpush2.msra.mxu0 0.0
  %1053 = vmatprep.mubr.f32.mxu0 0.0
  %1054 = vmatmul.mubr.f32.gmra.mxu0 %v797
  %v1055 = vpop.f32.mrf.mxu0
  %v1056 = vadd.f32 %v911, %v1055
  %v1057 = vpop.f32.mrf.mxu0
  %1058 = vmatprep.mubr.f32.mxu0 0.0
  %1059 = vmatmul.mubr.f32.gmra.mxu0 %v800
  %v1060 = vpop.f32.mrf.mxu0
  %v1061 = vadd.f32 %v916, %v1060
  %v1062 = vpop.f32.mrf.mxu0
  %1063 = vmatprep.mubr.f32.mxu0 0.0
  %1064 = vmatmul.mubr.f32.gmra.mxu0 %v803
  %v1065 = vpop.f32.mrf.mxu0
  %v1066 = vadd.f32 %v921, %v1065
  %v1067 = vpop.f32.mrf.mxu0
  %1068 = vmatprep.mubr.f32.mxu0 0.0
  %1069 = vmatmul.mubr.f32.gmra.mxu0 %v806
  %v1070 = vpop.f32.mrf.mxu0
  %v1071 = vadd.f32 %v926, %v1070
  %v1072 = vpop.f32.mrf.mxu0
  %1073 = vmatprep.mubr.f32.mxu0 0.0
  %1074 = vmatmul.mubr.f32.gmra.mxu0 %v809
  %v1075 = vpop.f32.mrf.mxu0
  %v1076 = vadd.f32 %v931, %v1075
  %v1077 = vpop.f32.mrf.mxu0
  %1078 = vmatprep.mubr.f32.mxu0 0.0
  %1079 = vmatmul.mubr.f32.gmra.mxu0 %v812
  %v1080 = vpop.f32.mrf.mxu0
  %v1081 = vadd.f32 %v936, %v1080
  %v1082 = vpop.f32.mrf.mxu0
  %1083 = vmatprep.mubr.f32.mxu0 0.0
  %1084 = vmatmul.mubr.f32.gmra.mxu0 %v815
  %v1085 = vpop.f32.mrf.mxu0
  %v1086 = vadd.f32 %v941, %v1085
  %v1087 = vpop.f32.mrf.mxu0
  %1088 = vmatprep.mubr.f32.mxu0 0.0
  %1089 = vmatmul.mubr.f32.gmra.mxu0 %v818
  %v1090 = vpop.f32.mrf.mxu0
  %v1091 = vadd.f32 %v946, %v1090
  %v1092 = vpop.f32.mrf.mxu0
  %1093 = vmatprep.mubr.f32.mxu0 0.0
  %1094 = vmatmul.mubr.f32.gmra.mxu0 %v821
  %v1095 = vpop.f32.mrf.mxu0
  %v1096 = vadd.f32 %v951, %v1095
  %v1097 = vpop.f32.mrf.mxu0
  %1098 = vmatprep.mubr.f32.mxu0 0.0
  %1099 = vmatmul.mubr.f32.gmra.mxu0 %v824
  %v1100 = vpop.f32.mrf.mxu0
  %v1101 = vadd.f32 %v956, %v1100
  %v1102 = vpop.f32.mrf.mxu0
  %1103 = vmatprep.mubr.f32.mxu0 0.0
  %1104 = vmatmul.mubr.f32.gmra.mxu0 %v827
  %v1105 = vpop.f32.mrf.mxu0
  %v1106 = vadd.f32 %v961, %v1105
  %v1107 = vpop.f32.mrf.mxu0
  %1108 = vmatprep.mubr.f32.mxu0 0.0
  %1109 = vmatmul.mubr.f32.gmra.mxu0 %v830
  %v1110 = vpop.f32.mrf.mxu0
  %v1111 = vadd.f32 %v966, %v1110
  %v1112 = vpop.f32.mrf.mxu0
  %1113 = vmatprep.mubr.f32.mxu0 0.0
  %1114 = vmatmul.mubr.f32.gmra.mxu0 %v833
  %v1115 = vpop.f32.mrf.mxu0
  %v1116 = vadd.f32 %v971, %v1115
  %v1117 = vpop.f32.mrf.mxu0
  %1118 = vmatprep.mubr.f32.mxu0 0.0
  %1119 = vmatmul.mubr.f32.gmra.mxu0 %v836
  %v1120 = vpop.f32.mrf.mxu0
  %v1121 = vadd.f32 %v976, %v1120
  %v1122 = vpop.f32.mrf.mxu0
  %1123 = vmatprep.mubr.f32.mxu0 0.0
  %1124 = vmatmul.mubr.f32.gmra.mxu0 %v839
  %v1125 = vpop.f32.mrf.mxu0
  %v1126 = vadd.f32 %v981, %v1125
  %v1127 = vpop.f32.mrf.mxu0
  %1128 = vmatprep.mubr.f32.mxu0 0.0
  %1129 = vmatmul.mubr.f32.gmra.mxu0 %v842
  %v1130 = vpop.f32.mrf.mxu0
  %v1131 = vadd.f32 %v986, %v1130
  %v1132 = vpop.f32.mrf.mxu0
  %1133 = vdwg.mxu0
  %vm1134 = vcmp.gt.f32.partialorder %v1056, 0.0
  %vm1135 = vcmp.gt.f32.partialorder %v1061, 0.0
  %vm1136 = vcmp.gt.f32.partialorder %v1066, 0.0
  %vm1137 = vcmp.gt.f32.partialorder %v1071, 0.0
  %vm1138 = vcmp.gt.f32.partialorder %v1076, 0.0
  %vm1139 = vcmp.gt.f32.partialorder %v1081, 0.0
  %vm1140 = vcmp.gt.f32.partialorder %v1086, 0.0
  %vm1141 = vcmp.gt.f32.partialorder %v1091, 0.0
  %vm1142 = vcmp.gt.f32.partialorder %v1096, 0.0
  %vm1143 = vcmp.gt.f32.partialorder %v1101, 0.0
  %vm1144 = vcmp.gt.f32.partialorder %v1106, 0.0
  %vm1145 = vcmp.gt.f32.partialorder %v1111, 0.0
  %vm1146 = vcmp.gt.f32.partialorder %v1116, 0.0
  %vm1147 = vcmp.gt.f32.partialorder %v1121, 0.0
  %vm1148 = vcmp.gt.f32.partialorder %v1126, 0.0
  %vm1149 = vcmp.gt.f32.partialorder %v1131, 0.0
  %v1150 = vmul.f32 %v1056, 1.442695
  %v1151 = vpow.pop %v1150
  %v1152 = vmul.f32 %v1061, 1.442695
  %v1153 = vpow.pop %v1152
  %v1154 = vmul.f32 %v1066, 1.442695
  %v1155 = vpow.pop %v1154
  %v1156 = vmul.f32 %v1071, 1.442695
  %v1157 = vpow.pop %v1156
  %v1158 = vmul.f32 %v1076, 1.442695
  %v1159 = vpow.pop %v1158
  %v1160 = vmul.f32 %v1081, 1.442695
  %v1161 = vpow.pop %v1160
  %v1162 = vmul.f32 %v1086, 1.442695
  %v1163 = vpow.pop %v1162
  %v1164 = vmul.f32 %v1091, 1.442695
  %v1165 = vpow.pop %v1164
  %v1166 = vmul.f32 %v1096, 1.442695
  %v1167 = vpow.pop %v1166
  %v1168 = vmul.f32 %v1101, 1.442695
  %v1169 = vpow.pop %v1168
  %v1170 = vmul.f32 %v1106, 1.442695
  %v1171 = vpow.pop %v1170
  %v1172 = vmul.f32 %v1111, 1.442695
  %v1173 = vpow.pop %v1172
  %v1174 = vmul.f32 %v1116, 1.442695
  %v1175 = vpow.pop %v1174
  %v1176 = vmul.f32 %v1121, 1.442695
  %v1177 = vpow.pop %v1176
  %v1178 = vmul.f32 %v1126, 1.442695
  %v1179 = vpow.pop %v1178
  %v1180 = vmul.f32 %v1131, 1.442695
  %v1181 = vpow.pop %v1180
  %v1182 = vsub.f32 %v1151, 1.0
  %v1183 = vsub.f32 %v1153, 1.0
  %v1184 = vsub.f32 %v1155, 1.0
  %v1185 = vsub.f32 %v1157, 1.0
  %v1186 = vsub.f32 %v1159, 1.0
  %v1187 = vsub.f32 %v1161, 1.0
  %v1188 = vsub.f32 %v1163, 1.0
  %v1189 = vsub.f32 %v1165, 1.0
  %v1190 = vsub.f32 %v1167, 1.0
  %v1191 = vsub.f32 %v1169, 1.0
  %v1192 = vsub.f32 %v1171, 1.0
  %v1193 = vsub.f32 %v1173, 1.0
  %v1194 = vsub.f32 %v1175, 1.0
  %v1195 = vsub.f32 %v1177, 1.0
  %v1196 = vsub.f32 %v1179, 1.0
  %v1197 = vsub.f32 %v1181, 1.0
  %v1198 = vmul.f32 %v1182, 1.6732632
  %v1199 = vmul.f32 %v1183, 1.6732632
  %v1200 = vmul.f32 %v1184, 1.6732632
  %v1201 = vmul.f32 %v1185, 1.6732632
  %v1202 = vmul.f32 %v1186, 1.6732632
  %v1203 = vmul.f32 %v1187, 1.6732632
  %v1204 = vmul.f32 %v1188, 1.6732632
  %v1205 = vmul.f32 %v1189, 1.6732632
  %v1206 = vmul.f32 %v1190, 1.6732632
  %v1207 = vmul.f32 %v1191, 1.6732632
  %v1208 = vmul.f32 %v1192, 1.6732632
  %v1209 = vmul.f32 %v1193, 1.6732632
  %v1210 = vmul.f32 %v1194, 1.6732632
  %v1211 = vmul.f32 %v1195, 1.6732632
  %v1212 = vmul.f32 %v1196, 1.6732632
  %v1213 = vmul.f32 %v1197, 1.6732632
  %v1214 = vsel %vm1134, %v1056, %v1198
  %v1215 = vsel %vm1135, %v1061, %v1199
  %v1216 = vsel %vm1136, %v1066, %v1200
  %v1217 = vsel %vm1137, %v1071, %v1201
  %v1218 = vsel %vm1138, %v1076, %v1202
  %v1219 = vsel %vm1139, %v1081, %v1203
  %v1220 = vsel %vm1140, %v1086, %v1204
  %v1221 = vsel %vm1141, %v1091, %v1205
  %v1222 = vsel %vm1142, %v1096, %v1206
  %v1223 = vsel %vm1143, %v1101, %v1207
  %v1224 = vsel %vm1144, %v1106, %v1208
  %v1225 = vsel %vm1145, %v1111, %v1209
  %v1226 = vsel %vm1146, %v1116, %v1210
  %v1227 = vsel %vm1147, %v1121, %v1211
  %v1228 = vsel %vm1148, %v1126, %v1212
  %v1229 = vsel %vm1149, %v1131, %v1213
  %v1230 = vmul.f32 %v1214, 1.050701
  %v1231 = vmul.f32 %v1215, 1.050701
  %v1232 = vmul.f32 %v1216, 1.050701
  %v1233 = vmul.f32 %v1217, 1.050701
  %v1234 = vmul.f32 %v1218, 1.050701
  %v1235 = vmul.f32 %v1219, 1.050701
  %v1236 = vmul.f32 %v1220, 1.050701
  %v1237 = vmul.f32 %v1221, 1.050701
  %v1238 = vmul.f32 %v1222, 1.050701
  %v1239 = vmul.f32 %v1223, 1.050701
  %v1240 = vmul.f32 %v1224, 1.050701
  %v1241 = vmul.f32 %v1225, 1.050701
  %v1242 = vmul.f32 %v1226, 1.050701
  %v1243 = vmul.f32 %v1227, 1.050701
  %v1244 = vmul.f32 %v1228, 1.050701
  %v1245 = vmul.f32 %v1229, 1.050701
  %v1246 = vld [vmem:[%s3] sm:$0x1]
  %v1247 = vld [vmem:[#allocation3] sm:$0x1]
  %1249 = vset.pattern.permute.xlu0 0
  %1250 = vperm.xlu0 %1249, %v1247
  %v1251 = vpop.permute.xlu0 %1250
  %v1253 = vlaneseq
  %v1254 = vshrl.u32 %v1253, 7
  %v1255 = vsub.s32 0, %v1254
  %v1256 = vrot.slane %v1251, %v1255
  %vm1257 = vcmask 130048
  %v1259 = vsel %vm1257, %v1246, 0
  %v1262 = vsel %vm1257, %v1230, 0
  %v1265 = vsel %vm1257, %v1231, 0
  %v1268 = vsel %vm1257, %v1232, 0
  %v1271 = vsel %vm1257, %v1233, 0
  %v1274 = vsel %vm1257, %v1234, 0
  %v1277 = vsel %vm1257, %v1235, 0
  %v1280 = vsel %vm1257, %v1236, 0
  %v1283 = vsel %vm1257, %v1237, 0
  %v1286 = vsel %vm1257, %v1238, 0
  %v1289 = vsel %vm1257, %v1239, 0
  %v1292 = vsel %vm1257, %v1240, 0
  %v1295 = vsel %vm1257, %v1241, 0
  %v1298 = vsel %vm1257, %v1242, 0
  %v1301 = vsel %vm1257, %v1243, 0
  %v1304 = vsel %vm1257, %v1244, 0
  %v1307 = vsel %vm1257, %v1245, 0
  %1309 = vmatprep.subr.mxu0 0.0
  %1310 = vmatpush1.xpose.msra.mxu0 %v1307
  %1311 = vmatprep.subr.mxu0 0.0
  %1312 = vmatpush1.xpose.msra.mxu0 %v1304
  %1313 = vmatprep.subr.mxu0 0.0
  %1314 = vmatpush1.xpose.msra.mxu0 %v1301
  %1315 = vmatprep.subr.mxu0 0.0
  %1316 = vmatpush1.xpose.msra.mxu0 %v1298
  %1317 = vmatprep.subr.mxu0 0.0
  %1318 = vmatpush1.xpose.msra.mxu0 %v1295
  %1319 = vmatprep.subr.mxu0 0.0
  %1320 = vmatpush1.xpose.msra.mxu0 %v1292
  %1321 = vmatprep.subr.mxu0 0.0
  %1322 = vmatpush1.xpose.msra.mxu0 %v1289
  %1323 = vmatprep.subr.mxu0 0.0
  %1324 = vmatpush1.xpose.msra.mxu0 %v1286
  %1325 = vmatprep.subr.mxu0 0.0
  %1326 = vmatpush1.xpose.msra.mxu0 %v1283
  %1327 = vmatprep.subr.mxu0 0.0
  %1328 = vmatpush1.xpose.msra.mxu0 %v1280
  %1329 = vmatprep.subr.mxu0 0.0
  %1330 = vmatpush1.xpose.msra.mxu0 %v1277
  %1331 = vmatprep.subr.mxu0 0.0
  %1332 = vmatpush1.xpose.msra.mxu0 %v1274
  %1333 = vmatprep.subr.mxu0 0.0
  %1334 = vmatpush1.xpose.msra.mxu0 %v1271
  %1335 = vmatprep.subr.mxu0 0.0
  %1336 = vmatpush1.xpose.msra.mxu0 %v1268
  %1337 = vmatprep.subr.mxu0 0.0
  %1338 = vmatpush1.xpose.msra.mxu0 %v1265
  %1339 = vmatprep.subr.mxu0 0.0
  %1340 = vmatpush1.xpose.msra.mxu0 %v1262
  %1341 = vmatprep.subr.mxu0 0.0
  %1342 = vmatpush2.xpose.msra.mxu0 0.0
  %1343 = vmatprep.subr.mxu0 0.0
  %1344 = vmatpush2.xpose.msra.mxu0 0.0
  %1345 = vmatprep.subr.mxu0 0.0
  %1346 = vmatpush2.xpose.msra.mxu0 0.0
  %1347 = vmatprep.subr.mxu0 0.0
  %1348 = vmatpush2.xpose.msra.mxu0 0.0
  %1349 = vmatprep.subr.mxu0 0.0
  %1350 = vmatpush2.xpose.msra.mxu0 0.0
  %1351 = vmatprep.subr.mxu0 0.0
  %1352 = vmatpush2.xpose.msra.mxu0 0.0
  %1353 = vmatprep.subr.mxu0 0.0
  %1354 = vmatpush2.xpose.msra.mxu0 0.0
  %1355 = vmatprep.subr.mxu0 0.0
  %1356 = vmatpush2.xpose.msra.mxu0 0.0
  %1357 = vmatprep.subr.mxu0 0.0
  %1358 = vmatpush2.xpose.msra.mxu0 0.0
  %1359 = vmatprep.subr.mxu0 0.0
  %1360 = vmatpush2.xpose.msra.mxu0 0.0
  %1361 = vmatprep.subr.mxu0 0.0
  %1362 = vmatpush2.xpose.msra.mxu0 0.0
  %1363 = vmatprep.subr.mxu0 0.0
  %1364 = vmatpush2.xpose.msra.mxu0 0.0
  %1365 = vmatprep.subr.mxu0 0.0
  %1366 = vmatpush2.xpose.msra.mxu0 0.0
  %1367 = vmatprep.subr.mxu0 0.0
  %1368 = vmatpush2.xpose.msra.mxu0 0.0
  %1369 = vmatprep.subr.mxu0 0.0
  %1370 = vmatpush2.xpose.msra.mxu0 0.0
  %1371 = vmatprep.subr.mxu0 0.0
  %1372 = vmatpush2.xpose.msra.mxu0 0.0
  %1373 = vmatprep.mubr.f32.mxu0 0.0
  %1374 = vmatmul.mubr.f32.gmra.mxu0 %v1259
  %v1375 = vpop.f32.mrf.mxu0
  %v1376 = vadd.f32 %v1256, %v1375
  %v1377 = vpop.f32.mrf.mxu0
  %1378 = vdwg.mxu0
  %v1379 = vxor.u32 %v1376, 2147483648
  %v1380 = vmul.f32 %v1379, 1.442695
  %v1381 = vpow.pop %v1380
  %v1382 = vadd.f32 %v1381, 1.0
  %v1383 = vrcp.pop %v1382
  %v1384 = vmul.f32 1.0, %v1383
  %v1385 = vld [vmem:[%s11] sm:$0xff]
  %v1386 = vld [vmem:[%s11 + $0x8] sm:$0xff]
  %v1387 = vld [vmem:[%s11 + $0x10] sm:$0xff]
  %v1388 = vld [vmem:[%s11 + $0x18] sm:$0xff]
  %v1389 = vld [vmem:[%s11 + $0x20] sm:$0xff]
  %v1390 = vld [vmem:[%s11 + $0x28] sm:$0xff]
  %v1391 = vld [vmem:[%s11 + $0x30] sm:$0xff]
  %v1392 = vld [vmem:[%s11 + $0x38] sm:$0xff]
  %v1393 = vld [vmem:[%s11 + $0x40] sm:$0xff]
  %v1394 = vld [vmem:[%s11 + $0x48] sm:$0xff]
  %v1395 = vld [vmem:[%s11 + $0x50] sm:$0xff]
  %v1396 = vld [vmem:[%s11 + $0x58] sm:$0xff]
  %v1397 = vld [vmem:[%s11 + $0x60] sm:$0xff]
  %v1398 = vld [vmem:[%s11 + $0x68] sm:$0xff]
  %v1399 = vld [vmem:[%s11 + $0x70] sm:$0xff]
  %v1400 = vld [vmem:[%s11 + $0x78] sm:$0xff]
  %v1401 = vld [vmem:[%s11 + $0x80] sm:$0xff]
  %v1402 = vld [vmem:[%s11 + $0x88] sm:$0xff]
  %v1403 = vld [vmem:[%s11 + $0x90] sm:$0xff]
  %v1404 = vld [vmem:[%s11 + $0x98] sm:$0xff]
  %v1405 = vld [vmem:[%s11 + $0xa0] sm:$0xff]
  %v1406 = vld [vmem:[%s11 + $0xa8] sm:$0xff]
  %v1407 = vld [vmem:[%s11 + $0xb0] sm:$0xff]
  %v1408 = vld [vmem:[%s11 + $0xb8] sm:$0xff]
  %v1409 = vld [vmem:[%s11 + $0xc0] sm:$0xff]
  %v1410 = vld [vmem:[%s11 + $0xc8] sm:$0xff]
  %v1411 = vld [vmem:[%s11 + $0xd0] sm:$0xff]
  %v1412 = vld [vmem:[%s11 + $0xd8] sm:$0xff]
  %v1413 = vld [vmem:[%s11 + $0xe0] sm:$0xff]
  %v1414 = vld [vmem:[%s11 + $0xe8] sm:$0xff]
  %v1415 = vld [vmem:[%s11 + $0xf0] sm:$0xff]
  %v1416 = vld [vmem:[%s11 + $0xf8] sm:$0xff]
  %v1417 = vld [vmem:[%s11 + $0x100] sm:$0xff]
  %v1418 = vld [vmem:[%s11 + $0x108] sm:$0xff]
  %v1419 = vld [vmem:[%s11 + $0x110] sm:$0xff]
  %v1420 = vld [vmem:[%s11 + $0x118] sm:$0xff]
  %v1421 = vld [vmem:[%s11 + $0x120] sm:$0xff]
  %v1422 = vld [vmem:[%s11 + $0x128] sm:$0xff]
  %v1423 = vld [vmem:[%s11 + $0x130] sm:$0xff]
  %v1424 = vld [vmem:[%s11 + $0x138] sm:$0xff]
  %v1425 = vld [vmem:[%s11 + $0x140] sm:$0xff]
  %v1426 = vld [vmem:[%s11 + $0x148] sm:$0xff]
  %v1427 = vld [vmem:[%s11 + $0x150] sm:$0xff]
  %v1428 = vld [vmem:[%s11 + $0x158] sm:$0xff]
  %v1429 = vld [vmem:[%s11 + $0x160] sm:$0xff]
  %v1430 = vld [vmem:[%s11 + $0x168] sm:$0xff]
  %v1431 = vld [vmem:[%s11 + $0x170] sm:$0xff]
  %v1432 = vld [vmem:[%s11 + $0x178] sm:$0xff]
  %v1433 = vld [vmem:[%s11 + $0x180] sm:$0xff]
  %v1434 = vld [vmem:[%s11 + $0x188] sm:$0xff]
  %v1435 = vld [vmem:[%s11 + $0x190] sm:$0xff]
  %v1436 = vld [vmem:[%s11 + $0x198] sm:$0xff]
  %v1437 = vld [vmem:[%s11 + $0x1a0] sm:$0xff]
  %v1438 = vld [vmem:[%s11 + $0x1a8] sm:$0xff]
  %v1439 = vld [vmem:[%s11 + $0x1b0] sm:$0xff]
  %v1440 = vld [vmem:[%s11 + $0x1b8] sm:$0xff]
  %v1441 = vld [vmem:[%s11 + $0x1c0] sm:$0xff]
  %v1442 = vld [vmem:[%s11 + $0x1c8] sm:$0xff]
  %v1443 = vld [vmem:[%s11 + $0x1d0] sm:$0xff]
  %v1444 = vld [vmem:[%s11 + $0x1d8] sm:$0xff]
  %v1445 = vld [vmem:[%s11 + $0x1e0] sm:$0xff]
  %v1446 = vld [vmem:[%s11 + $0x1e8] sm:$0xff]
  %v1447 = vld [vmem:[%s11 + $0x1f0] sm:$0xff]
  %v1448 = vld [vmem:[%s11 + $0x1f8] sm:$0xff]
  %1449 = vmatprep.subr.mxu0 %v1446
  %1450 = vmatpush1.msra.mxu0 %v1445
  %1451 = vmatprep.subr.mxu0 %v1442
  %1452 = vmatpush1.msra.mxu0 %v1441
  %1453 = vmatprep.subr.mxu0 %v1438
  %1454 = vmatpush1.msra.mxu0 %v1437
  %1455 = vmatprep.subr.mxu0 %v1434
  %1456 = vmatpush1.msra.mxu0 %v1433
  %1457 = vmatprep.subr.mxu0 %v1430
  %1458 = vmatpush1.msra.mxu0 %v1429
  %1459 = vmatprep.subr.mxu0 %v1426
  %1460 = vmatpush1.msra.mxu0 %v1425
  %1461 = vmatprep.subr.mxu0 %v1422
  %1462 = vmatpush1.msra.mxu0 %v1421
  %1463 = vmatprep.subr.mxu0 %v1418
  %1464 = vmatpush1.msra.mxu0 %v1417
  %1465 = vmatprep.subr.mxu0 %v1414
  %1466 = vmatpush1.msra.mxu0 %v1413
  %1467 = vmatprep.subr.mxu0 %v1410
  %1468 = vmatpush1.msra.mxu0 %v1409
  %1469 = vmatprep.subr.mxu0 %v1406
  %1470 = vmatpush1.msra.mxu0 %v1405
  %1471 = vmatprep.subr.mxu0 %v1402
  %1472 = vmatpush1.msra.mxu0 %v1401
  %1473 = vmatprep.subr.mxu0 %v1398
  %1474 = vmatpush1.msra.mxu0 %v1397
  %1475 = vmatprep.subr.mxu0 %v1394
  %1476 = vmatpush1.msra.mxu0 %v1393
  %1477 = vmatprep.subr.mxu0 %v1390
  %1478 = vmatpush1.msra.mxu0 %v1389
  %1479 = vmatprep.subr.mxu0 %v1386
  %1480 = vmatpush1.msra.mxu0 %v1385
  %1481 = vmatprep.subr.mxu0 0.0
  %1482 = vmatpush2.msra.mxu0 0.0
  %1483 = vmatprep.subr.mxu0 0.0
  %1484 = vmatpush2.msra.mxu0 0.0
  %1485 = vmatprep.subr.mxu0 0.0
  %1486 = vmatpush2.msra.mxu0 0.0
  %1487 = vmatprep.subr.mxu0 0.0
  %1488 = vmatpush2.msra.mxu0 0.0
  %1489 = vmatprep.subr.mxu0 0.0
  %1490 = vmatpush2.msra.mxu0 0.0
  %1491 = vmatprep.subr.mxu0 0.0
  %1492 = vmatpush2.msra.mxu0 0.0
  %1493 = vmatprep.subr.mxu0 0.0
  %1494 = vmatpush2.msra.mxu0 0.0
  %1495 = vmatprep.subr.mxu0 0.0
  %1496 = vmatpush2.msra.mxu0 0.0
  %1497 = vmatprep.subr.mxu0 0.0
  %1498 = vmatpush2.msra.mxu0 0.0
  %1499 = vmatprep.subr.mxu0 0.0
  %1500 = vmatpush2.msra.mxu0 0.0
  %1501 = vmatprep.subr.mxu0 0.0
  %1502 = vmatpush2.msra.mxu0 0.0
  %1503 = vmatprep.subr.mxu0 0.0
  %1504 = vmatpush2.msra.mxu0 0.0
  %1505 = vmatprep.subr.mxu0 0.0
  %1506 = vmatpush2.msra.mxu0 0.0
  %1507 = vmatprep.subr.mxu0 0.0
  %1508 = vmatpush2.msra.mxu0 0.0
  %1509 = vmatprep.subr.mxu0 0.0
  %1510 = vmatpush2.msra.mxu0 0.0
  %1511 = vmatprep.subr.mxu0 0.0
  %1512 = vmatpush2.msra.mxu0 0.0
  %1513 = vmatprep.mubr.f32.mxu0 0.0
  %1514 = vmatmul.mubr.f32.gmra.mxu0 %v1384
  %v1515 = vpop.f32.mrf.mxu0
  %v1516 = vadd.f32 0.0, %v1515
  %v1517 = vpop.f32.mrf.mxu0
  %v1518 = vadd.f32 0.0, %v1517
  %1519 = vdwg.mxu0
  %1520 = vmatprep.subr.mxu0 %v1448
  %1521 = vmatpush1.msra.mxu0 %v1447
  %1522 = vmatprep.subr.mxu0 %v1444
  %1523 = vmatpush1.msra.mxu0 %v1443
  %1524 = vmatprep.subr.mxu0 %v1440
  %1525 = vmatpush1.msra.mxu0 %v1439
  %1526 = vmatprep.subr.mxu0 %v1436
  %1527 = vmatpush1.msra.mxu0 %v1435
  %1528 = vmatprep.subr.mxu0 %v1432
  %1529 = vmatpush1.msra.mxu0 %v1431
  %1530 = vmatprep.subr.mxu0 %v1428
  %1531 = vmatpush1.msra.mxu0 %v1427
  %1532 = vmatprep.subr.mxu0 %v1424
  %1533 = vmatpush1.msra.mxu0 %v1423
  %1534 = vmatprep.subr.mxu0 %v1420
  %1535 = vmatpush1.msra.mxu0 %v1419
  %1536 = vmatprep.subr.mxu0 %v1416
  %1537 = vmatpush1.msra.mxu0 %v1415
  %1538 = vmatprep.subr.mxu0 %v1412
  %1539 = vmatpush1.msra.mxu0 %v1411
  %1540 = vmatprep.subr.mxu0 %v1408
  %1541 = vmatpush1.msra.mxu0 %v1407
  %1542 = vmatprep.subr.mxu0 %v1404
  %1543 = vmatpush1.msra.mxu0 %v1403
  %1544 = vmatprep.subr.mxu0 %v1400
  %1545 = vmatpush1.msra.mxu0 %v1399
  %1546 = vmatprep.subr.mxu0 %v1396
  %1547 = vmatpush1.msra.mxu0 %v1395
  %1548 = vmatprep.subr.mxu0 %v1392
  %1549 = vmatpush1.msra.mxu0 %v1391
  %1550 = vmatprep.subr.mxu0 %v1388
  %1551 = vmatpush1.msra.mxu0 %v1387
  %1552 = vmatprep.subr.mxu0 0.0
  %1553 = vmatpush2.msra.mxu0 0.0
  %1554 = vmatprep.subr.mxu0 0.0
  %1555 = vmatpush2.msra.mxu0 0.0
  %1556 = vmatprep.subr.mxu0 0.0
  %1557 = vmatpush2.msra.mxu0 0.0
  %1558 = vmatprep.subr.mxu0 0.0
  %1559 = vmatpush2.msra.mxu0 0.0
  %1560 = vmatprep.subr.mxu0 0.0
  %1561 = vmatpush2.msra.mxu0 0.0
  %1562 = vmatprep.subr.mxu0 0.0
  %1563 = vmatpush2.msra.mxu0 0.0
  %1564 = vmatprep.subr.mxu0 0.0
  %1565 = vmatpush2.msra.mxu0 0.0
  %1566 = vmatprep.subr.mxu0 0.0
  %1567 = vmatpush2.msra.mxu0 0.0
  %1568 = vmatprep.subr.mxu0 0.0
  %1569 = vmatpush2.msra.mxu0 0.0
  %1570 = vmatprep.subr.mxu0 0.0
  %1571 = vmatpush2.msra.mxu0 0.0
  %1572 = vmatprep.subr.mxu0 0.0
  %1573 = vmatpush2.msra.mxu0 0.0
  %1574 = vmatprep.subr.mxu0 0.0
  %1575 = vmatpush2.msra.mxu0 0.0
  %1576 = vmatprep.subr.mxu0 0.0
  %1577 = vmatpush2.msra.mxu0 0.0
  %1578 = vmatprep.subr.mxu0 0.0
  %1579 = vmatpush2.msra.mxu0 0.0
  %1580 = vmatprep.subr.mxu0 0.0
  %1581 = vmatpush2.msra.mxu0 0.0
  %1582 = vmatprep.subr.mxu0 0.0
  %1583 = vmatpush2.msra.mxu0 0.0
  %1584 = vmatprep.mubr.f32.mxu0 0.0
  %1585 = vmatmul.mubr.f32.gmra.mxu0 %v1384
  %v1586 = vpop.f32.mrf.mxu0
  %v1587 = vadd.f32 0.0, %v1586
  %v1588 = vpop.f32.mrf.mxu0
  %v1589 = vadd.f32 0.0, %v1588
  %1590 = vdwg.mxu0
  %v1591 = vmax.f32 %v1516, 1e-08
  %v1592 = vmax.f32 %v1518, 1e-08
  %v1593 = vmax.f32 %v1587, 1e-08
  %v1594 = vmax.f32 %v1589, 1e-08
  %v1595 = vmin.f32 %v1591, 1.0
  %v1596 = vmin.f32 %v1592, 1.0
  %v1597 = vmin.f32 %v1593, 1.0
  %v1598 = vmin.f32 %v1594, 1.0
  %v1603 = vcombine.low %v1595, %v1596
  %v1604 = vcombine.low %v1597, %v1598
  %v1606 = vunpack.c.l.s4 1966171168
  %v1607 = vunpack.c.0.s8 %v1606
  %v1608 = vlaneseq
  %v1609 = vshrl.u32 %v1608, 7
  %v1610 = vsub.s32 %v1607, %v1609
  %v1611 = vrot.slane %v1603, %v1610
  %v1613 = vunpack.c.l.s4 1966171168
  %v1614 = vunpack.c.0.s8 %v1613
  %v1615 = vlaneseq
  %v1616 = vshrl.u32 %v1615, 7
  %v1617 = vsub.s32 %v1614, %v1616
  %v1618 = vrot.slane %v1604, %v1617
  %v1619 = vcombine.low %v1611, %v1618
  %v1621 = vunpack.c.l.s4 1966171168
  %v1622 = vunpack.c.0.s8 %v1621
  %v1623 = vlaneseq
  %v1624 = vshrl.u32 %v1623, 7
  %v1625 = vsub.s32 %v1622, %v1624
  %v1626 = vrot.slane %v1619, %v1625
  %v1628 = vlaneseq
  %vm1629 = vcmp.ge.s32.totalorder %v1628, 0
  %vm1630 = vcmp.lt.s32.totalorder %v1628, 512
  %vm1631 = vmand %vm1629, %vm1630
  %1632 = vst.msk [vmem:[%s14] sm:$0xf] %vm1631, %v1626
  %v1633 = vrcp.pop %v1595
  %v1634 = vrcp.pop %v1596
  %v1635 = vrcp.pop %v1597
  %v1636 = vrcp.pop %v1598
  %v1637 = vld [vmem:[%s0] sm:$0xff]
  %v1638 = vld [vmem:[%s0 + $0x8] sm:$0xff]
  %v1639 = vld [vmem:[%s0 + $0x10] sm:$0xff]
  %v1640 = vld [vmem:[%s0 + $0x18] sm:$0xff]
  %v1641 = vld [vmem:[%s0 + $0x20] sm:$0xff]
  %v1642 = vld [vmem:[%s0 + $0x28] sm:$0xff]
  %v1643 = vld [vmem:[%s0 + $0x30] sm:$0xff]
  %v1644 = vld [vmem:[%s0 + $0x38] sm:$0xff]
  %v1645 = vld [vmem:[%s0 + $0x40] sm:$0xff]
  %v1646 = vld [vmem:[%s0 + $0x48] sm:$0xff]
  %v1647 = vld [vmem:[%s0 + $0x50] sm:$0xff]
  %v1648 = vld [vmem:[%s0 + $0x58] sm:$0xff]
  %v1649 = vld [vmem:[%s0 + $0x60] sm:$0xff]
  %v1650 = vld [vmem:[%s0 + $0x68] sm:$0xff]
  %v1651 = vld [vmem:[%s0 + $0x70] sm:$0xff]
  %v1652 = vld [vmem:[%s0 + $0x78] sm:$0xff]
  %v1653 = vsel %vm51, %v1637, 0.0
  %v1654 = vsel %vm51, %v1638, 0.0
  %v1655 = vadd.f32 %v1653, %v1654
  %v1656 = vsel %vm51, %v1639, 0.0
  %v1657 = vadd.f32 %v1655, %v1656
  %v1658 = vsel %vm51, %v1640, 0.0
  %v1659 = vadd.f32 %v1657, %v1658
  %v1660 = vsel %vm51, %v1641, 0.0
  %v1661 = vadd.f32 %v1659, %v1660
  %v1662 = vsel %vm51, %v1642, 0.0
  %v1663 = vadd.f32 %v1661, %v1662
  %v1664 = vsel %vm51, %v1643, 0.0
  %v1665 = vadd.f32 %v1663, %v1664
  %v1666 = vsel %vm51, %v1644, 0.0
  %v1667 = vadd.f32 %v1665, %v1666
  %v1668 = vrot.slane %v1667, 4
  %v1669 = vadd.f32 %v1667, %v1668
  %v1670 = vrot.slane %v1669, 2
  %v1671 = vadd.f32 %v1669, %v1670
  %v1672 = vrot.slane %v1671, 1
  %v1673 = vadd.f32 %v1671, %v1672
  %v1674 = vsel %vm51, %v1645, 0.0
  %v1675 = vsel %vm51, %v1646, 0.0
  %v1676 = vadd.f32 %v1674, %v1675
  %v1677 = vsel %vm51, %v1647, 0.0
  %v1678 = vadd.f32 %v1676, %v1677
  %v1679 = vsel %vm51, %v1648, 0.0
  %v1680 = vadd.f32 %v1678, %v1679
  %v1681 = vsel %vm51, %v1649, 0.0
  %v1682 = vadd.f32 %v1680, %v1681
  %v1683 = vsel %vm51, %v1650, 0.0
  %v1684 = vadd.f32 %v1682, %v1683
  %v1685 = vsel %vm51, %v1651, 0.0
  %v1686 = vadd.f32 %v1684, %v1685
  %v1687 = vsel %vm51, %v1652, 0.0
  %v1688 = vadd.f32 %v1686, %v1687
  %v1689 = vrot.slane %v1688, 4
  %v1690 = vadd.f32 %v1688, %v1689
  %v1691 = vrot.slane %v1690, 2
  %v1692 = vadd.f32 %v1690, %v1691
  %v1693 = vrot.slane %v1692, 1
  %v1694 = vadd.f32 %v1692, %v1693
  %v1695 = vrcp.pop 64.0
  %v1696 = vmul.f32 %v1673, %v1695
  %v1697 = vmul.f32 %v1694, %v1695
  %v1698 = vld [vmem:[%s5] sm:$0xff]
  %v1699 = vld [vmem:[%s5 + $0x8] sm:$0xff]
  %v1700 = vld [vmem:[%s5 + $0x10] sm:$0xff]
  %v1701 = vld [vmem:[%s5 + $0x18] sm:$0xff]
  %v1702 = vld [vmem:[%s6] sm:$0x1]
  %v1704 = vlaneseq
  %v1705 = vshrl.u32 %v1704, 7
  %v1706 = vsub.s32 0, %v1705
  %v1707 = vrot.slane %v1702, %v1706
  %vm1711 = vcmask 1041409
  %v1712 = vsel %vm1711, %v1697, %v1696
  %v1713 = vsel %vm51, %v1712, 0
  %1715 = vmatprep.subr.mxu0 0.0
  %1716 = vmatpush1.msra.mxu0 0.0
  %1717 = vmatprep.subr.mxu0 0.0
  %1718 = vmatpush1.msra.mxu0 0.0
  %1719 = vmatprep.subr.mxu0 0.0
  %1720 = vmatpush1.msra.mxu0 0.0
  %1721 = vmatprep.subr.mxu0 0.0
  %1722 = vmatpush1.msra.mxu0 0.0
  %1723 = vmatprep.subr.mxu0 0.0
  %1724 = vmatpush1.msra.mxu0 0.0
  %1725 = vmatprep.subr.mxu0 0.0
  %1726 = vmatpush1.msra.mxu0 0.0
  %1727 = vmatprep.subr.mxu0 0.0
  %1728 = vmatpush1.msra.mxu0 0.0
  %1729 = vmatprep.subr.mxu0 0.0
  %1730 = vmatpush1.msra.mxu0 0.0
  %1731 = vmatprep.subr.mxu0 0.0
  %1732 = vmatpush1.msra.mxu0 0.0
  %1733 = vmatprep.subr.mxu0 0.0
  %1734 = vmatpush1.msra.mxu0 0.0
  %1735 = vmatprep.subr.mxu0 0.0
  %1736 = vmatpush1.msra.mxu0 0.0
  %1737 = vmatprep.subr.mxu0 0.0
  %1738 = vmatpush1.msra.mxu0 0.0
  %1739 = vmatprep.subr.mxu0 0.0
  %1740 = vmatpush1.msra.mxu0 %v1701
  %1741 = vmatprep.subr.mxu0 0.0
  %1742 = vmatpush1.msra.mxu0 %v1700
  %1743 = vmatprep.subr.mxu0 0.0
  %1744 = vmatpush1.msra.mxu0 %v1699
  %1745 = vmatprep.subr.mxu0 0.0
  %1746 = vmatpush1.msra.mxu0 %v1698
  %1747 = vmatprep.subr.mxu0 0.0
  %1748 = vmatpush2.msra.mxu0 0.0
  %1749 = vmatprep.subr.mxu0 0.0
  %1750 = vmatpush2.msra.mxu0 0.0
  %1751 = vmatprep.subr.mxu0 0.0
  %1752 = vmatpush2.msra.mxu0 0.0
  %1753 = vmatprep.subr.mxu0 0.0
  %1754 = vmatpush2.msra.mxu0 0.0
  %1755 = vmatprep.subr.mxu0 0.0
  %1756 = vmatpush2.msra.mxu0 0.0
  %1757 = vmatprep.subr.mxu0 0.0
  %1758 = vmatpush2.msra.mxu0 0.0
  %1759 = vmatprep.subr.mxu0 0.0
  %1760 = vmatpush2.msra.mxu0 0.0
  %1761 = vmatprep.subr.mxu0 0.0
  %1762 = vmatpush2.msra.mxu0 0.0
  %1763 = vmatprep.subr.mxu0 0.0
  %1764 = vmatpush2.msra.mxu0 0.0
  %1765 = vmatprep.subr.mxu0 0.0
  %1766 = vmatpush2.msra.mxu0 0.0
  %1767 = vmatprep.subr.mxu0 0.0
  %1768 = vmatpush2.msra.mxu0 0.0
  %1769 = vmatprep.subr.mxu0 0.0
  %1770 = vmatpush2.msra.mxu0 0.0
  %1771 = vmatprep.subr.mxu0 0.0
  %1772 = vmatpush2.msra.mxu0 0.0
  %1773 = vmatprep.subr.mxu0 0.0
  %1774 = vmatpush2.msra.mxu0 0.0
  %1775 = vmatprep.subr.mxu0 0.0
  %1776 = vmatpush2.msra.mxu0 0.0
  %1777 = vmatprep.subr.mxu0 0.0
  %1778 = vmatpush2.msra.mxu0 0.0
  %1779 = vmatprep.mubr.f32.mxu0 0.0
  %1780 = vmatmul.mubr.f32.gmra.mxu0 %v1713
  %v1781 = vpop.f32.mrf.mxu0
  %v1782 = vadd.f32 %v1707, %v1781
  %v1783 = vpop.f32.mrf.mxu0
  %1784 = vdwg.mxu0
  %vm1785 = vcmp.gt.f32.partialorder %v1782, 0.0
  %v1786 = vmul.f32 %v1782, 1.442695
  %v1787 = vpow.pop %v1786
  %v1788 = vsub.f32 %v1787, 1.0
  %v1789 = vmul.f32 %v1788, 1.6732632
  %v1790 = vsel %vm1785, %v1782, %v1789
  %v1791 = vmul.f32 %v1790, 1.050701
  %v1792 = vld [vmem:[%s7] sm:$0xff]
  %v1793 = vld [vmem:[%s7 + $0x8] sm:$0xff]
  %v1794 = vld [vmem:[%s7 + $0x10] sm:$0xff]
  %v1795 = vld [vmem:[%s7 + $0x18] sm:$0xff]
  %v1796 = vld [vmem:[%s8] sm:$0x1]
  %v1798 = vlaneseq
  %v1799 = vshrl.u32 %v1798, 7
  %v1800 = vsub.s32 0, %v1799
  %v1801 = vrot.slane %v1796, %v1800
  %v1804 = vsel %vm51, %v1791, 0
  %1806 = vmatprep.subr.mxu0 0.0
  %1807 = vmatpush1.msra.mxu0 0.0
  %1808 = vmatprep.subr.mxu0 0.0
  %1809 = vmatpush1.msra.mxu0 0.0
  %1810 = vmatprep.subr.mxu0 0.0
  %1811 = vmatpush1.msra.mxu0 0.0
  %1812 = vmatprep.subr.mxu0 0.0
  %1813 = vmatpush1.msra.mxu0 0.0
  %1814 = vmatprep.subr.mxu0 0.0
  %1815 = vmatpush1.msra.mxu0 0.0
  %1816 = vmatprep.subr.mxu0 0.0
  %1817 = vmatpush1.msra.mxu0 0.0
  %1818 = vmatprep.subr.mxu0 0.0
  %1819 = vmatpush1.msra.mxu0 0.0
  %1820 = vmatprep.subr.mxu0 0.0
  %1821 = vmatpush1.msra.mxu0 0.0
  %1822 = vmatprep.subr.mxu0 0.0
  %1823 = vmatpush1.msra.mxu0 0.0
  %1824 = vmatprep.subr.mxu0 0.0
  %1825 = vmatpush1.msra.mxu0 0.0
  %1826 = vmatprep.subr.mxu0 0.0
  %1827 = vmatpush1.msra.mxu0 0.0
  %1828 = vmatprep.subr.mxu0 0.0
  %1829 = vmatpush1.msra.mxu0 0.0
  %1830 = vmatprep.subr.mxu0 0.0
  %1831 = vmatpush1.msra.mxu0 %v1795
  %1832 = vmatprep.subr.mxu0 0.0
  %1833 = vmatpush1.msra.mxu0 %v1794
  %1834 = vmatprep.subr.mxu0 0.0
  %1835 = vmatpush1.msra.mxu0 %v1793
  %1836 = vmatprep.subr.mxu0 0.0
  %1837 = vmatpush1.msra.mxu0 %v1792
  %1838 = vmatprep.subr.mxu0 0.0
  %1839 = vmatpush2.msra.mxu0 0.0
  %1840 = vmatprep.subr.mxu0 0.0
  %1841 = vmatpush2.msra.mxu0 0.0
  %1842 = vmatprep.subr.mxu0 0.0
  %1843 = vmatpush2.msra.mxu0 0.0
  %1844 = vmatprep.subr.mxu0 0.0
  %1845 = vmatpush2.msra.mxu0 0.0
  %1846 = vmatprep.subr.mxu0 0.0
  %1847 = vmatpush2.msra.mxu0 0.0
  %1848 = vmatprep.subr.mxu0 0.0
  %1849 = vmatpush2.msra.mxu0 0.0
  %1850 = vmatprep.subr.mxu0 0.0
  %1851 = vmatpush2.msra.mxu0 0.0
  %1852 = vmatprep.subr.mxu0 0.0
  %1853 = vmatpush2.msra.mxu0 0.0
  %1854 = vmatprep.subr.mxu0 0.0
  %1855 = vmatpush2.msra.mxu0 0.0
  %1856 = vmatprep.subr.mxu0 0.0
  %1857 = vmatpush2.msra.mxu0 0.0
  %1858 = vmatprep.subr.mxu0 0.0
  %1859 = vmatpush2.msra.mxu0 0.0
  %1860 = vmatprep.subr.mxu0 0.0
  %1861 = vmatpush2.msra.mxu0 0.0
  %1862 = vmatprep.subr.mxu0 0.0
  %1863 = vmatpush2.msra.mxu0 0.0
  %1864 = vmatprep.subr.mxu0 0.0
  %1865 = vmatpush2.msra.mxu0 0.0
  %1866 = vmatprep.subr.mxu0 0.0
  %1867 = vmatpush2.msra.mxu0 0.0
  %1868 = vmatprep.subr.mxu0 0.0
  %1869 = vmatpush2.msra.mxu0 0.0
  %1870 = vmatprep.mubr.f32.mxu0 0.0
  %1871 = vmatmul.mubr.f32.gmra.mxu0 %v1804
  %v1872 = vpop.f32.mrf.mxu0
  %v1873 = vadd.f32 %v1801, %v1872
  %v1874 = vpop.f32.mrf.mxu0
  %1875 = vdwg.mxu0
  %vm1876 = vcmp.gt.f32.partialorder %v1873, 0.0
  %v1877 = vmul.f32 %v1873, 1.442695
  %v1878 = vpow.pop %v1877
  %v1879 = vsub.f32 %v1878, 1.0
  %v1880 = vmul.f32 %v1879, 1.6732632
  %v1881 = vsel %vm1876, %v1873, %v1880
  %v1882 = vmul.f32 %v1881, 1.050701
  %v1883 = vld [vmem:[%s9] sm:$0x1]
  %v1885 = vlaneseq
  %v1886 = vshrl.u32 %v1885, 7
  %v1887 = vsub.s32 0, %v1886
  %v1888 = vrot.slane %v1883, %v1887
  %v1890 = vmul.f32 %v1882, %v1888
  %v1891 = vsel %vm53, %v1890, 0.0
  %1892 = vadd.xlane.f32.xlu0 %v1891
  %v1893 = vpop.xlane.xlu0 %1892
  %v1894 = vld [vmem:[#allocation4] sm:$0x1]
  %v1896 = vlaneseq
  %v1897 = vshrl.u32 %v1896, 7
  %v1898 = vsub.s32 0, %v1897
  %v1899 = vrot.slane %v1894, %v1898
  %v1901 = vadd.f32 %v1893, %v1899
  %v1902 = vxor.u32 %v1901, 2147483648
  %v1903 = vmul.f32 %v1902, 1.442695
  %v1904 = vpow.pop %v1903
  %v1905 = vadd.f32 %v1904, 1.0
  %v1906 = vrcp.pop %v1905
  %v1907 = vmul.f32 1.0, %v1906
  %vm1908 = vcmask 1024
  %1909 = vst.msk [vmem:[%s15] sm:$0x3] %vm1908, %v1907
  %v1910 = vld [vmem:[%s12] sm:$0x77]
  %v1911 = vsub.f32 1.0, %v1595
  %v1912 = vsub.f32 1.0, %v1596
  %1914 = vset.pattern.permute.xlu0 0
  %1915 = vperm.xlu0 %1914, %v1907
  %v1916 = vpop.permute.xlu0 %1915
  %v1918 = vmul.f32 %v1916, %v1911
  %v1919 = vmul.f32 %v1916, %v1912
  %v1920 = vlaneseq
  %v1921 = vshrl.u32 %v1920, 7
  %v1922 = vsub.s32 0, %v1921
  %v1923 = vrot.slane %v1918, %v1922
  %v1924 = vlaneseq
  %v1925 = vshrl.u32 %v1924, 7
  %v1926 = vsub.s32 0, %v1925
  %v1927 = vrot.slane %v1919, %v1926
  %v1930 = vcombine.low %v1923, %v1927
  %v1932 = vsub.f32 %v1910, %v1930
  %v1933 = vlaneseq
  %v1934 = vshrl.u32 %v1933, 7
  %v1935 = vsub.s32 0, %v1934
  %v1936 = vrot.slane %v1633, %v1935
  %v1937 = vlaneseq
  %v1938 = vshrl.u32 %v1937, 7
  %v1939 = vsub.s32 0, %v1938
  %v1940 = vrot.slane %v1634, %v1939
  %v1943 = vcombine.low %v1936, %v1940
  %v1945 = vmul.f32 %v1932, %v1943
  %v1946 = vmax.f32 %v1945, 0.0
  %v1947 = vmin.f32 %v1946, 1.0
  %1948 = vst [vmem:[%s13] sm:$0x77] %v1947
  %s1949 = scalar_lea.vmem %s12, 8
  %v1950 = vld [vmem:[%s1949] sm:$0x77]
  %v1951 = vsub.f32 1.0, %v1597
  %v1952 = vsub.f32 1.0, %v1598
  %v1955 = vrot.slane %v1951, 7
  %v1956 = vrot.slane %v1952, 7
  %v1959 = vmul.f32 %v1916, %v1955
  %v1960 = vmul.f32 %v1916, %v1956
  %v1961 = vlaneseq
  %v1962 = vshrl.u32 %v1961, 7
  %v1963 = vsub.s32 1, %v1962
  %v1964 = vrot.slane %v1959, %v1963
  %v1965 = vlaneseq
  %v1966 = vshrl.u32 %v1965, 7
  %v1967 = vsub.s32 1, %v1966
  %v1968 = vrot.slane %v1960, %v1967
  %v1971 = vcombine.low %v1964, %v1968
  %v1973 = vsub.f32 %v1950, %v1971
  %v1974 = vlaneseq
  %v1975 = vshrl.u32 %v1974, 7
  %v1976 = vsub.s32 0, %v1975
  %v1977 = vrot.slane %v1635, %v1976
  %v1978 = vlaneseq
  %v1979 = vshrl.u32 %v1978, 7
  %v1980 = vsub.s32 0, %v1979
  %v1981 = vrot.slane %v1636, %v1980
  %v1984 = vcombine.low %v1977, %v1981
  %v1986 = vmul.f32 %v1973, %v1984
  %v1987 = vmax.f32 %v1986, 0.0
  %v1988 = vmin.f32 %v1987, 1.0
  %s1989 = scalar_lea.vmem %s13, 8
  %1990 = vst [vmem:[%s1989] sm:$0x77] %v1988
  // Predicated region
  $region54: #{as_model_forward.1} parent=0 // pred_check
    _
  $region55: #{as_model_forward.1} parent=0 // pred_check_branch
    %1992 = sbr.rel (0) target = $region57
  $region56: #{as_model_forward.1} parent=0 // pred_region
    _
  $region57: #{as_model_forward.1} parent=0 // pred_fallthru
    _
  // Predicated region
  $region58: #{as_model_forward.1} parent=0 // pred_check
    _
  $region59: #{as_model_forward.1} parent=0 // pred_check_branch
    %1994 = sbr.rel (0) target = $region61
  $region60: #{as_model_forward.1} parent=0 // pred_region
    _
  $region61: #{as_model_forward.1} parent=0 // pred_fallthru
    _
  // Predicated region
  $region62: #{as_model_forward.1} parent=0 // pred_check
    _
  $region63: #{as_model_forward.1} parent=0 // pred_check_branch
    %1996 = sbr.rel (0) target = $region65
  $region64: #{as_model_forward.1} parent=0 // pred_region
    _
  $region65: #{as_model_forward.1} parent=0 // pred_fallthru
    _
  // Predicated region
  $region66: #{as_model_forward.1} parent=0 // pred_check
    _
  $region67: #{as_model_forward.1} parent=0 // pred_check_branch
    %1998 = sbr.rel (0) target = $region69
  $region68: #{as_model_forward.1} parent=0 // pred_region
    _
  $region69: #{as_model_forward.1} parent=0 // pred_fallthru
    _
  // Predicated region
  $region70: #{as_model_forward.1} parent=0 // pred_check
    _
  $region71: #{as_model_forward.1} parent=0 // pred_check_branch
    %2000 = sbr.rel (0) target = $region73
  $region72: #{as_model_forward.1} parent=0 // pred_region
    _
  $region73: #{as_model_forward.1} parent=0 // pred_fallthru
    _
  // Predicated region
  $region74: #{as_model_forward.1} parent=0 // pred_check
    _
  $region75: #{as_model_forward.1} parent=0 // pred_check_branch
    %2002 = sbr.rel (0) target = $region77
  $region76: #{as_model_forward.1} parent=0 // pred_region
    _
  $region77: #{as_model_forward.1} parent=0 // pred_fallthru
    _

</llo_original>
